<compile_context>
chip_gen: v7x
topology: tpu7x:2x2x1
jax: 0.10.0
libtpu: 0.0.40
codegen_flags: <defaults>
</compile_context>

<pallas_src>
import functools

import jax
import jax.numpy as jnp
from jax.experimental import pallas as pl
from jax.experimental.pallas import tpu as pltpu


def _round_up(x, m):
    return (x + m - 1) // m * m


def _choose_block(B, block_b):
    """Lane-dense batch block; >= 2 grid steps when B allows it (v7x megacore)."""
    if B <= 128:
        return 128
    half = _round_up((B + 1) // 2, 128)
    return max(128, min(block_b, half))


def rainnet_kernel(x_ref,
                   w1_ref, c1_ref, w2_ref, c2_ref,
                   w3_ref, c3_ref, w4_ref, c4_ref,
                   o_ref):
    """Whole MLP fused.  x arrives in its natural (blk, F) f32 layout; everything
    downstream runs in the transposed (features, blk) lane-dense layout."""
    xb = x_ref[...].astype(jnp.bfloat16)                      # (blk, F): f32 -> bf16 (VPU)

    # Layer 1: contract the shared F axis directly ('NT' matmul) -> (128, blk), f32 acc.
    h = jnp.einsum("of,bf->ob", w1_ref[...], xb,
                   preferred_element_type=jnp.float32) + c1_ref[...]
    h = jnp.maximum(h, 0.0).astype(jnp.bfloat16)              # (128, blk)

    h = jnp.dot(w2_ref[...], h, preferred_element_type=jnp.float32) + c2_ref[...]
    h = jnp.maximum(h, 0.0).astype(jnp.bfloat16)              # (64, blk)

    h = jnp.dot(w3_ref[...], h, preferred_element_type=jnp.float32) + c3_ref[...]
    h = jnp.maximum(h, 0.0).astype(jnp.bfloat16)              # (64, blk)

    o = jnp.dot(w4_ref[...], h, preferred_element_type=jnp.float32) + c4_ref[...]
    o_ref[...] = o                                            # (1, blk) f32, lane-dense


def init_params(key, input_size):
    """Deterministic params mimicking PyTorch default Linear/BatchNorm1d init, with
    eval-mode BN folded into the Linear weights/biases (one-time precompute).

    Returns (w1, c1, w2, c2, w3, c3, w4, c4):
      w_l : (out_features, in_features) bf16  (PyTorch layout, BN scale folded in)
      c_l : (out_features, 1)           f32   (bias with BN scale/shift folded in)
    """
    dims = [(input_size, 128), (128, 64), (64, 64), (64, 1)]
    eps = 1e-5

    layers = []
    for fin, fout in dims:
        key, kw, kb = jax.random.split(key, 3)
        bound = 1.0 / (fin ** 0.5)
        w = jax.random.uniform(kw, (fout, fin), jnp.float32, -bound, bound)
        b = jax.random.uniform(kb, (fout,), jnp.float32, -bound, bound)
        layers.append((w, b))

    # Fold eval-mode BatchNorm1d:  y = (x W^T + b) * s + t  ==  x (W*s)^T + (b*s + t)
    # with s = gamma / sqrt(var + eps), t = beta - mean * s.
    bn_channels = (128, 64, 64)
    params = []
    for idx, (w, b) in enumerate(layers):
        if idx < 3:
            c = bn_channels[idx]
            gamma = jnp.ones((c,), jnp.float32)
            beta = jnp.zeros((c,), jnp.float32)
            mean = jnp.zeros((c,), jnp.float32)
            var = jnp.ones((c,), jnp.float32)
            s = gamma / jnp.sqrt(var + eps)
            t = beta - mean * s
            w = w * s[:, None]
            b = b * s + t
        params.append(w.astype(jnp.bfloat16))
        params.append(b.reshape(-1, 1).astype(jnp.float32))
    return tuple(params)


@functools.partial(jax.jit, static_argnames=("block_b",))
def rainnet_forward(x, params, *, block_b=1024):
    """x: (B, input_size) f32 (bf16 also accepted, halves HBM reads) -> (B, 1) f32."""
    B, F = x.shape
    blk = _choose_block(B, block_b)
    grid = pl.cdiv(B, blk)

    in_specs = [pl.BlockSpec((blk, F), lambda i: (i, 0))]
    # Params: full-array blocks with a constant index -> resident, no per-step re-DMA.
    in_specs += [pl.BlockSpec(p.shape, lambda i: (0, 0)) for p in params]

    # Explicit VMEM budget (matters on v7x: 64 MiB physical, 32 MiB default scoped limit):
    param_bytes = sum(int(p.size) * p.dtype.itemsize for p in params)
    est = (2 * blk * F * x.dtype.itemsize       # double-buffered input blocks
           + 2 * blk * 4                        # double-buffered output blocks
           + 2 * param_bytes                    # resident params
           + (128 + 64 + 64) * blk * (4 + 2)    # f32 + bf16 intermediates
           + (8 << 20))                         # compiler slack
    vmem_limit = int(min(max(est, 32 << 20), 64 << 20))

    out = pl.pallas_call(
        rainnet_kernel,
        out_shape=jax.ShapeDtypeStruct((1, B), jnp.float32),
        grid_spec=pltpu.PrefetchScalarGridSpec(
            num_scalar_prefetch=0,
            grid=(grid,),
            in_specs=in_specs,
            out_specs=pl.BlockSpec((1, blk), lambda i: (0, i)),
        ),
        compiler_params=pltpu.CompilerParams(
            dimension_semantics=("parallel",),   # batch blocks shard across TCs (v7x)
            vmem_limit_bytes=vmem_limit,
        ),
    )(x, *params)

    # Lane-dense (1, B) slab -> (B, 1): pure reshape, no slice / padded-lane copy.
    return out.reshape(B, 1)


def rainnet_reference(x, params):
    """Pure-JAX reference of the same eval-mode forward (bf16 matmuls, f32 accumulate)."""
    w1, c1, w2, c2, w3, c3, w4, c4 = params
    h = x
    for w, c in ((w1, c1), (w2, c2), (w3, c3)):
        h = jnp.dot(h.astype(jnp.bfloat16), w.T,
                    preferred_element_type=jnp.float32) + c.T
        h = jnp.maximum(h, 0.0)
    return jnp.dot(h.astype(jnp.bfloat16), w4.T,
                   preferred_element_type=jnp.float32) + c4.T


if __name__ == "__main__":
    key = jax.random.PRNGKey(0)
    input_size = 32
    batch = 1000   # non-multiple of 128: exercises the clipped last block; grid = 2 steps

    kx, kp = jax.random.split(key)
    x = jax.random.normal(kx, (batch, input_size), jnp.float32)
    params = init_params(kp, input_size)

    out = jax.block_until_ready(rainnet_forward(x, params))

    ref = rainnet_reference(x, params)
    assert out.shape == (batch, 1)
    assert jnp.allclose(out, ref, atol=1e-3, rtol=1e-3), "mismatch vs reference"

    print("KERNEL_OK")
</pallas_src>

<mosaic_0001>
module attributes {stable_mosaic.version = 11 : i64} {
  func.func @rainnet_kernel(%arg0: i32, %arg1: memref<512x32xf32, #tpu.memory_space<vmem>>, %arg2: memref<128x32xbf16, #tpu.memory_space<vmem>>, %arg3: memref<128x1xf32, #tpu.memory_space<vmem>>, %arg4: memref<64x128xbf16, #tpu.memory_space<vmem>>, %arg5: memref<64x1xf32, #tpu.memory_space<vmem>>, %arg6: memref<64x64xbf16, #tpu.memory_space<vmem>>, %arg7: memref<64x1xf32, #tpu.memory_space<vmem>>, %arg8: memref<1x64xbf16, #tpu.memory_space<vmem>>, %arg9: memref<1x1xf32, #tpu.memory_space<vmem>>, %arg10: memref<1x512xf32, #tpu.memory_space<vmem>>) attributes {dimension_semantics = [#tpu.dimension_semantics<parallel>], iteration_bounds = array<i64: 2>, scalar_prefetch = 0 : i64, scratch_operands = 0 : i64, tpu.core_type = #tpu.core_type<tc>, window_params = [{transform_indices = @transform_0, window_bounds = array<i64: 512, 32>}, {pipeline_mode = #tpu.pipeline_mode<synchronous>, transform_indices = @transform_1, window_bounds = array<i64: 128, 32>}, {pipeline_mode = #tpu.pipeline_mode<synchronous>, transform_indices = @transform_2, window_bounds = array<i64: 128, 1>}, {pipeline_mode = #tpu.pipeline_mode<synchronous>, transform_indices = @transform_3, window_bounds = array<i64: 64, 128>}, {pipeline_mode = #tpu.pipeline_mode<synchronous>, transform_indices = @transform_4, window_bounds = array<i64: 64, 1>}, {pipeline_mode = #tpu.pipeline_mode<synchronous>, transform_indices = @transform_5, window_bounds = array<i64: 64, 64>}, {pipeline_mode = #tpu.pipeline_mode<synchronous>, transform_indices = @transform_6, window_bounds = array<i64: 64, 1>}, {pipeline_mode = #tpu.pipeline_mode<synchronous>, transform_indices = @transform_7, window_bounds = array<i64: 1, 64>}, {pipeline_mode = #tpu.pipeline_mode<synchronous>, transform_indices = @transform_8, window_bounds = array<i64: 1, 1>}, {transform_indices = @transform_9, window_bounds = array<i64: 1, 512>}]} {
    %c0 = arith.constant 0 : index
    %c0_0 = arith.constant 0 : index
    %0 = vector.load %arg1[%c0, %c0_0] : memref<512x32xf32, #tpu.memory_space<vmem>>, vector<512x32xf32>
    %1 = arith.truncf %0 : vector<512x32xf32> to vector<512x32xbf16>
    %c0_1 = arith.constant 0 : index
    %c0_2 = arith.constant 0 : index
    %2 = vector.load %arg2[%c0_1, %c0_2] : memref<128x32xbf16, #tpu.memory_space<vmem>>, vector<128x32xbf16>
    "tpu.trace_start"() <{level = 10 : i32, message = "of,bf->ob"}> : () -> ()
    %cst = arith.constant dense<0.000000e+00> : vector<128x512xf32>
    %3 = tpu.matmul %2, %1, %cst {dimension_numbers = #tpu.dot_dimension_numbers<[1], [1], [0], [0], [0, 0, 1, 0], [], []>} : vector<128x32xbf16>, vector<512x32xbf16>, vector<128x512xf32> -> vector<128x512xf32>
    "tpu.trace_stop"() : () -> ()
    %c0_3 = arith.constant 0 : index
    %c0_4 = arith.constant 0 : index
    %4 = vector.load %arg3[%c0_3, %c0_4] : memref<128x1xf32, #tpu.memory_space<vmem>>, vector<128x1xf32>
    %5 = vector.broadcast %4 : vector<128x1xf32> to vector<128x512xf32>
    %6 = arith.addf %3, %5 : vector<128x512xf32>
    %cst_5 = arith.constant 0.000000e+00 : f32
    %7 = vector.broadcast %cst_5 : f32 to vector<128x512xf32>
    %8 = arith.maximumf %6, %7 : vector<128x512xf32>
    %9 = arith.truncf %8 : vector<128x512xf32> to vector<128x512xbf16>
    %c0_6 = arith.constant 0 : index
    %c0_7 = arith.constant 0 : index
    %10 = vector.load %arg4[%c0_6, %c0_7] : memref<64x128xbf16, #tpu.memory_space<vmem>>, vector<64x128xbf16>
    %cst_8 = arith.constant dense<0.000000e+00> : vector<64x512xf32>
    %11 = tpu.matmul %10, %9, %cst_8 {dimension_numbers = #tpu.dot_dimension_numbers<[1], [0], [0], [1], [0, 0, 1, 1], [], []>} : vector<64x128xbf16>, vector<128x512xbf16>, vector<64x512xf32> -> vector<64x512xf32>
    %c0_9 = arith.constant 0 : index
    %c0_10 = arith.constant 0 : index
    %12 = vector.load %arg5[%c0_9, %c0_10] : memref<64x1xf32, #tpu.memory_space<vmem>>, vector<64x1xf32>
    %13 = vector.broadcast %12 : vector<64x1xf32> to vector<64x512xf32>
    %14 = arith.addf %11, %13 : vector<64x512xf32>
    %cst_11 = arith.constant 0.000000e+00 : f32
    %15 = vector.broadcast %cst_11 : f32 to vector<64x512xf32>
    %16 = arith.maximumf %14, %15 : vector<64x512xf32>
    %17 = arith.truncf %16 : vector<64x512xf32> to vector<64x512xbf16>
    %c0_12 = arith.constant 0 : index
    %c0_13 = arith.constant 0 : index
    %18 = vector.load %arg6[%c0_12, %c0_13] : memref<64x64xbf16, #tpu.memory_space<vmem>>, vector<64x64xbf16>
    %cst_14 = arith.constant dense<0.000000e+00> : vector<64x512xf32>
    %19 = tpu.matmul %18, %17, %cst_14 {dimension_numbers = #tpu.dot_dimension_numbers<[1], [0], [0], [1], [0, 0, 1, 1], [], []>} : vector<64x64xbf16>, vector<64x512xbf16>, vector<64x512xf32> -> vector<64x512xf32>
    %c0_15 = arith.constant 0 : index
    %c0_16 = arith.constant 0 : index
    %20 = vector.load %arg7[%c0_15, %c0_16] : memref<64x1xf32, #tpu.memory_space<vmem>>, vector<64x1xf32>
    %21 = vector.broadcast %20 : vector<64x1xf32> to vector<64x512xf32>
    %22 = arith.addf %19, %21 : vector<64x512xf32>
    %cst_17 = arith.constant 0.000000e+00 : f32
    %23 = vector.broadcast %cst_17 : f32 to vector<64x512xf32>
    %24 = arith.maximumf %22, %23 : vector<64x512xf32>
    %25 = arith.truncf %24 : vector<64x512xf32> to vector<64x512xbf16>
    %c0_18 = arith.constant 0 : index
    %c0_19 = arith.constant 0 : index
    %26 = vector.load %arg8[%c0_18, %c0_19] : memref<1x64xbf16, #tpu.memory_space<vmem>>, vector<1x64xbf16>
    %cst_20 = arith.constant dense<0.000000e+00> : vector<1x512xf32>
    %27 = tpu.matmul %26, %25, %cst_20 {dimension_numbers = #tpu.dot_dimension_numbers<[1], [0], [0], [1], [0, 0, 1, 1], [], []>} : vector<1x64xbf16>, vector<64x512xbf16>, vector<1x512xf32> -> vector<1x512xf32>
    %c0_21 = arith.constant 0 : index
    %c0_22 = arith.constant 0 : index
    %28 = vector.load %arg9[%c0_21, %c0_22] : memref<1x1xf32, #tpu.memory_space<vmem>>, vector<1x1xf32>
    %29 = vector.broadcast %28 : vector<1x1xf32> to vector<1x512xf32>
    %30 = arith.addf %27, %29 : vector<1x512xf32>
    %c0_23 = arith.constant 0 : index
    %c0_24 = arith.constant 0 : index
    %31 = vector.load %arg10[%c0_23, %c0_24] : memref<1x512xf32, #tpu.memory_space<vmem>>, vector<1x512xf32>
    tpu.vector_store %arg10[%c0_23, %c0_24], %30 {strides = array<i32>} : memref<1x512xf32, #tpu.memory_space<vmem>>, vector<1x512xf32>,
    return
  }
  func.func @transform_0(%arg0: i32) -> (i32, i32) {
    %c0_i32 = arith.constant 0 : i32
    %c0_i32_0 = arith.constant 0 : i32
    return %arg0, %c0_i32 : i32, i32
  }
  func.func @transform_1(%arg0: i32) -> (i32, i32) {
    %c0_i32 = arith.constant 0 : i32
    %c0_i32_0 = arith.constant 0 : i32
    %c0_i32_1 = arith.constant 0 : i32
    return %c0_i32, %c0_i32_0 : i32, i32
  }
  func.func @transform_2(%arg0: i32) -> (i32, i32) {
    %c0_i32 = arith.constant 0 : i32
    %c0_i32_0 = arith.constant 0 : i32
    %c0_i32_1 = arith.constant 0 : i32
    return %c0_i32, %c0_i32_0 : i32, i32
  }
  func.func @transform_3(%arg0: i32) -> (i32, i32) {
    %c0_i32 = arith.constant 0 : i32
    %c0_i32_0 = arith.constant 0 : i32
    %c0_i32_1 = arith.constant 0 : i32
    return %c0_i32, %c0_i32_0 : i32, i32
  }
  func.func @transform_4(%arg0: i32) -> (i32, i32) {
    %c0_i32 = arith.constant 0 : i32
    %c0_i32_0 = arith.constant 0 : i32
    %c0_i32_1 = arith.constant 0 : i32
    return %c0_i32, %c0_i32_0 : i32, i32
  }
  func.func @transform_5(%arg0: i32) -> (i32, i32) {
    %c0_i32 = arith.constant 0 : i32
    %c0_i32_0 = arith.constant 0 : i32
    %c0_i32_1 = arith.constant 0 : i32
    return %c0_i32, %c0_i32_0 : i32, i32
  }
  func.func @transform_6(%arg0: i32) -> (i32, i32) {
    %c0_i32 = arith.constant 0 : i32
    %c0_i32_0 = arith.constant 0 : i32
    %c0_i32_1 = arith.constant 0 : i32
    return %c0_i32, %c0_i32_0 : i32, i32
  }
  func.func @transform_7(%arg0: i32) -> (i32, i32) {
    %c0_i32 = arith.constant 0 : i32
    %c0_i32_0 = arith.constant 0 : i32
    %c0_i32_1 = arith.constant 0 : i32
    return %c0_i32, %c0_i32_0 : i32, i32
  }
  func.func @transform_8(%arg0: i32) -> (i32, i32) {
    %c0_i32 = arith.constant 0 : i32
    %c0_i32_0 = arith.constant 0 : i32
    %c0_i32_1 = arith.constant 0 : i32
    return %c0_i32, %c0_i32_0 : i32, i32
  }
  func.func @transform_9(%arg0: i32) -> (i32, i32) {
    %c0_i32 = arith.constant 0 : i32
    %c0_i32_0 = arith.constant 0 : i32
    return %c0_i32, %arg0 : i32, i32
  }
}

</mosaic_0001>

<llo_original>
// kernel: rainnet_forward.1
$region0: #{rainnet_forward.1}
  #allocation0 [shape = 'u32[]', space=smem, size = 0x4, offset = 0x4, fixed_abs, tag = 'smem constant byte address 0x4 - core index']
  #allocation1 [shape = 'u32[144,128]{1,0:T(1,128)}', space=vmem, size = 0x12000, scoped, tag = 'internal scratch']
  #allocation2 [shape = 'f32[1,1]{1,0:T(1,128)S(1)}', space=vmem, size = 0x200, scoped, tag = 'scoped memory for rainnet_forward.1']
  %s0 = inlined_call_operand.vmem [shape: f32[1000,32], index: 0, kind: input, shape index: {}]
  %s1 = inlined_call_operand.vmem [shape: bf16[128,32], index: 1, kind: input, shape index: {}]
  %s2 = inlined_call_operand.vmem [shape: f32[128,1], index: 2, kind: input, shape index: {}]
  %s3 = inlined_call_operand.vmem [shape: bf16[64,128], index: 3, kind: input, shape index: {}]
  %s4 = inlined_call_operand.vmem [shape: f32[64,1], index: 4, kind: input, shape index: {}]
  %s5 = inlined_call_operand.vmem [shape: bf16[64,64], index: 5, kind: input, shape index: {}]
  %s6 = inlined_call_operand.vmem [shape: f32[64,1], index: 6, kind: input, shape index: {}]
  %s7 = inlined_call_operand.vmem [shape: bf16[1,64], index: 7, kind: input, shape index: {}]
  %s8 = inlined_call_operand.<no memory space> [shape: f32[1,1], index: 8, kind: input, shape index: {}]
  %s9 = inlined_call_operand.hbm [shape: f32[1,1000], index: 9, kind: output, shape index: {}]
  %s10 = sld [smem:[#allocation0]]
  $region69: #{rainnet_forward.1} parent=0
    _
  %s12 = ssub.s32 1, %s10
  %s13 = scalar_select 0, %s12, %s10
  %v14 = vstv %s8
  %15 = vst [vmem:[#allocation2] sm:$0x1] %v14
  $region1: #{rainnet_forward.1} parent=0
    #allocation3 [shape = 'u8[4096]{0}', space=vmem, size = 0x1000, scoped, tag = 'output window, operand 0']
    #allocation4 [shape = 's32[2]{0}', space=sflag, size = 0x8, scoped, tag = 'scoped memory for rainnet_forward.1']
    %16 = vsyncpa [#allocation4], 0
    %s17 = scalar_lea.sflag [#allocation4], 1
    %18 = vsyncpa %s17, 0
    loop: start=0, step=1, limit=4
    $region2: #{rainnet_forward.1} parent=1 // loop_pre_header
      _
    $region3: #{rainnet_forward.1} parent=1 // loop_header
      %s20 = sphi 0, %s24
      %p21 = scmp.ge.s32.totalorder %s20, 4
      %s30 = sphi 0, %s32
      %s33 = sphi 0, %s30
      %s34 = sphi 0, %s33
      %s50 = sphi 0, %s34
      %s54 = sphi 0, %s54
      %s56 = sphi 0, %s54
      %s57 = sphi 0, %s56
      %s71 = sphi 0, %s57
      %s75 = sphi 0, %s75
      %s77 = sphi 0, %s75
      %s78 = sphi 0, %s77
      %s92 = sphi 0, %s78
      %s96 = sphi 0, %s96
      %s98 = sphi 0, %s96
      %s99 = sphi 0, %s98
      %s113 = sphi 0, %s99
      %s117 = sphi 0, %s117
      %s119 = sphi 0, %s117
      %s120 = sphi 0, %s119
      %s134 = sphi 0, %s120
      %s138 = sphi 0, %s138
      %s140 = sphi 0, %s138
      %s141 = sphi 0, %s140
      %s155 = sphi 0, %s141
      %s159 = sphi 0, %s159
      %s161 = sphi 0, %s159
      %s162 = sphi 0, %s161
      %s176 = sphi 0, %s162
      %s180 = sphi 0, %s180
      %s182 = sphi 0, %s180
      %s183 = sphi 0, %s182
      %s197 = sphi 0, %s183
      %s201 = sphi 0, %s201
      %s203 = sphi 0, %s201
      %s204 = sphi 0, %s203
      %s218 = sphi 0, %s204
      %s224 = sphi 0, %s226
      %s227 = sphi 0, %s224
      %s228 = sphi 0, %s227
      %s244 = sphi 0, %s228
    $region4: #{rainnet_forward.1} parent=1 // loop_header_branch
      %23 = sbr.rel (%p21) target = $region8
    $region5: #{rainnet_forward.1} parent=1 // loop_body
      %s25 = ssub.s32 %s20, 1
      %s26 = ssub.s32 %s20, 2
      %s27 = sadd.s32 %s20, 1
      %s28 = ssub.s32 %s20, %s27
      %p29 = scmp.eq.s32.totalorder %s28, 0
      %s31 = sadd.s32 %s30, 1
      %s32 = scalar_select %p29, %s30, %s31
      %p35 = pneg %p29
      %p36 = scmp.eq.s32.totalorder %s20, 1
      %p37 = por %p35, %p36
      %p38 = scmp.ne.s32.totalorder %s30, %s33
      %p39 = scmp.eq.s32.totalorder %s20, 0
      %p40 = por %p38, %p39
      %p41 = scmp.ne.s32.totalorder %s30, %s33
      %p42 = scmp.eq.s32.totalorder %s25, 1
      %p43 = por %p41, %p42
      %p44 = scmp.ne.s32.totalorder %s33, %s34
      %p45 = scmp.eq.s32.totalorder %s25, 0
      %p46 = por %p44, %p45
      %p47 = scmp.ne.s32.totalorder %s33, %s34
      %p48 = scmp.eq.s32.totalorder %s26, 1
      %p49 = por %p47, %p48
      %p51 = scmp.ne.s32.totalorder %s34, %s50
      %p52 = scmp.eq.s32.totalorder %s26, 0
      %p53 = por %p51, %p52
      %s55 = sadd.s32 %s54, 1
      %p58 = scmp.eq.s32.totalorder %s20, 1
      %p59 = scmp.ne.s32.totalorder %s54, %s56
      %p60 = scmp.eq.s32.totalorder %s20, 0
      %p61 = por %p59, %p60
      %p62 = scmp.ne.s32.totalorder %s54, %s56
      %p63 = scmp.eq.s32.totalorder %s25, 1
      %p64 = por %p62, %p63
      %p65 = scmp.ne.s32.totalorder %s56, %s57
      %p66 = scmp.eq.s32.totalorder %s25, 0
      %p67 = por %p65, %p66
      %p68 = scmp.ne.s32.totalorder %s56, %s57
      %p69 = scmp.eq.s32.totalorder %s26, 1
      %p70 = por %p68, %p69
      %p72 = scmp.ne.s32.totalorder %s57, %s71
      %p73 = scmp.eq.s32.totalorder %s26, 0
      %p74 = por %p72, %p73
      %s76 = sadd.s32 %s75, 1
      %p79 = scmp.eq.s32.totalorder %s20, 1
      %p80 = scmp.ne.s32.totalorder %s75, %s77
      %p81 = scmp.eq.s32.totalorder %s20, 0
      %p82 = por %p80, %p81
      %p83 = scmp.ne.s32.totalorder %s75, %s77
      %p84 = scmp.eq.s32.totalorder %s25, 1
      %p85 = por %p83, %p84
      %p86 = scmp.ne.s32.totalorder %s77, %s78
      %p87 = scmp.eq.s32.totalorder %s25, 0
      %p88 = por %p86, %p87
      %p89 = scmp.ne.s32.totalorder %s77, %s78
      %p90 = scmp.eq.s32.totalorder %s26, 1
      %p91 = por %p89, %p90
      %p93 = scmp.ne.s32.totalorder %s78, %s92
      %p94 = scmp.eq.s32.totalorder %s26, 0
      %p95 = por %p93, %p94
      %s97 = sadd.s32 %s96, 1
      %p100 = scmp.eq.s32.totalorder %s20, 1
      %p101 = scmp.ne.s32.totalorder %s96, %s98
      %p102 = scmp.eq.s32.totalorder %s20, 0
      %p103 = por %p101, %p102
      %p104 = scmp.ne.s32.totalorder %s96, %s98
      %p105 = scmp.eq.s32.totalorder %s25, 1
      %p106 = por %p104, %p105
      %p107 = scmp.ne.s32.totalorder %s98, %s99
      %p108 = scmp.eq.s32.totalorder %s25, 0
      %p109 = por %p107, %p108
      %p110 = scmp.ne.s32.totalorder %s98, %s99
      %p111 = scmp.eq.s32.totalorder %s26, 1
      %p112 = por %p110, %p111
      %p114 = scmp.ne.s32.totalorder %s99, %s113
      %p115 = scmp.eq.s32.totalorder %s26, 0
      %p116 = por %p114, %p115
      %s118 = sadd.s32 %s117, 1
      %p121 = scmp.eq.s32.totalorder %s20, 1
      %p122 = scmp.ne.s32.totalorder %s117, %s119
      %p123 = scmp.eq.s32.totalorder %s20, 0
      %p124 = por %p122, %p123
      %p125 = scmp.ne.s32.totalorder %s117, %s119
      %p126 = scmp.eq.s32.totalorder %s25, 1
      %p127 = por %p125, %p126
      %p128 = scmp.ne.s32.totalorder %s119, %s120
      %p129 = scmp.eq.s32.totalorder %s25, 0
      %p130 = por %p128, %p129
      %p131 = scmp.ne.s32.totalorder %s119, %s120
      %p132 = scmp.eq.s32.totalorder %s26, 1
      %p133 = por %p131, %p132
      %p135 = scmp.ne.s32.totalorder %s120, %s134
      %p136 = scmp.eq.s32.totalorder %s26, 0
      %p137 = por %p135, %p136
      %s139 = sadd.s32 %s138, 1
      %p142 = scmp.eq.s32.totalorder %s20, 1
      %p143 = scmp.ne.s32.totalorder %s138, %s140
      %p144 = scmp.eq.s32.totalorder %s20, 0
      %p145 = por %p143, %p144
      %p146 = scmp.ne.s32.totalorder %s138, %s140
      %p147 = scmp.eq.s32.totalorder %s25, 1
      %p148 = por %p146, %p147
      %p149 = scmp.ne.s32.totalorder %s140, %s141
      %p150 = scmp.eq.s32.totalorder %s25, 0
      %p151 = por %p149, %p150
      %p152 = scmp.ne.s32.totalorder %s140, %s141
      %p153 = scmp.eq.s32.totalorder %s26, 1
      %p154 = por %p152, %p153
      %p156 = scmp.ne.s32.totalorder %s141, %s155
      %p157 = scmp.eq.s32.totalorder %s26, 0
      %p158 = por %p156, %p157
      %s160 = sadd.s32 %s159, 1
      %p163 = scmp.eq.s32.totalorder %s20, 1
      %p164 = scmp.ne.s32.totalorder %s159, %s161
      %p165 = scmp.eq.s32.totalorder %s20, 0
      %p166 = por %p164, %p165
      %p167 = scmp.ne.s32.totalorder %s159, %s161
      %p168 = scmp.eq.s32.totalorder %s25, 1
      %p169 = por %p167, %p168
      %p170 = scmp.ne.s32.totalorder %s161, %s162
      %p171 = scmp.eq.s32.totalorder %s25, 0
      %p172 = por %p170, %p171
      %p173 = scmp.ne.s32.totalorder %s161, %s162
      %p174 = scmp.eq.s32.totalorder %s26, 1
      %p175 = por %p173, %p174
      %p177 = scmp.ne.s32.totalorder %s162, %s176
      %p178 = scmp.eq.s32.totalorder %s26, 0
      %p179 = por %p177, %p178
      %s181 = sadd.s32 %s180, 1
      %p184 = scmp.eq.s32.totalorder %s20, 1
      %p185 = scmp.ne.s32.totalorder %s180, %s182
      %p186 = scmp.eq.s32.totalorder %s20, 0
      %p187 = por %p185, %p186
      %p188 = scmp.ne.s32.totalorder %s180, %s182
      %p189 = scmp.eq.s32.totalorder %s25, 1
      %p190 = por %p188, %p189
      %p191 = scmp.ne.s32.totalorder %s182, %s183
      %p192 = scmp.eq.s32.totalorder %s25, 0
      %p193 = por %p191, %p192
      %p194 = scmp.ne.s32.totalorder %s182, %s183
      %p195 = scmp.eq.s32.totalorder %s26, 1
      %p196 = por %p194, %p195
      %p198 = scmp.ne.s32.totalorder %s183, %s197
      %p199 = scmp.eq.s32.totalorder %s26, 0
      %p200 = por %p198, %p199
      %s202 = sadd.s32 %s201, 1
      %p205 = scmp.eq.s32.totalorder %s20, 1
      %p206 = scmp.ne.s32.totalorder %s201, %s203
      %p207 = scmp.eq.s32.totalorder %s20, 0
      %p208 = por %p206, %p207
      %p209 = scmp.ne.s32.totalorder %s201, %s203
      %p210 = scmp.eq.s32.totalorder %s25, 1
      %p211 = por %p209, %p210
      %p212 = scmp.ne.s32.totalorder %s203, %s204
      %p213 = scmp.eq.s32.totalorder %s25, 0
      %p214 = por %p212, %p213
      %p215 = scmp.ne.s32.totalorder %s203, %s204
      %p216 = scmp.eq.s32.totalorder %s26, 1
      %p217 = por %p215, %p216
      %p219 = scmp.ne.s32.totalorder %s204, %s218
      %p220 = scmp.eq.s32.totalorder %s26, 0
      %p221 = por %p219, %p220
      %s222 = ssub.s32 %s20, %s27
      %p223 = scmp.eq.s32.totalorder %s222, 0
      %s225 = sadd.s32 %s224, 1
      %s226 = scalar_select %p223, %s224, %s225
      %p229 = pneg %p223
      %p230 = scmp.eq.s32.totalorder %s20, 1
      %p231 = por %p229, %p230
      %p232 = scmp.ne.s32.totalorder %s224, %s227
      %p233 = scmp.eq.s32.totalorder %s20, 0
      %p234 = por %p232, %p233
      %p235 = scmp.ne.s32.totalorder %s224, %s227
      %p236 = scmp.eq.s32.totalorder %s25, 1
      %p237 = por %p235, %p236
      %p238 = scmp.ne.s32.totalorder %s227, %s228
      %p239 = scmp.eq.s32.totalorder %s25, 0
      %p240 = por %p238, %p239
      %p241 = scmp.ne.s32.totalorder %s227, %s228
      %p242 = scmp.eq.s32.totalorder %s26, 1
      %p243 = por %p241, %p242
      %p245 = scmp.ne.s32.totalorder %s228, %s244
      %p246 = scmp.eq.s32.totalorder %s26, 0
      %p247 = por %p245, %p246
      %p248 = scmp.le.s32.totalorder 1, %s20
      %p249 = scmp.lt.s32.totalorder %s20, 3
      %p250 = pnand %p248, %p249
      %p251 = pneg %p250
      // Predicated region
      $region9: #{rainnet_forward.1} parent=5 // pred_check
        _
      $region10: #{rainnet_forward.1} parent=5 // pred_check_branch
        %253 = sbr.rel (%p250) target = $region12
      $region11: #{rainnet_forward.1} parent=5 // pred_region
        %s254 = ssub.s32 %s20, 1
        // Predicated region
        $region13: #{rainnet_forward.1} parent=11 // pred_check
          %p255 = pneg %p67
        $region14: #{rainnet_forward.1} parent=11 // pred_check_branch
          %257 = sbr.rel (%p255) target = $region16
        $region15: #{rainnet_forward.1} parent=11 // pred_region
          _
        $region16: #{rainnet_forward.1} parent=11 // pred_fallthru
          _
        // Predicated region
        $region17: #{rainnet_forward.1} parent=11 // pred_check
          %p258 = pneg %p88
        $region18: #{rainnet_forward.1} parent=11 // pred_check_branch
          %260 = sbr.rel (%p258) target = $region20
        $region19: #{rainnet_forward.1} parent=11 // pred_region
          _
        $region20: #{rainnet_forward.1} parent=11 // pred_fallthru
          _
        // Predicated region
        $region21: #{rainnet_forward.1} parent=11 // pred_check
          %p261 = pneg %p109
        $region22: #{rainnet_forward.1} parent=11 // pred_check_branch
          %263 = sbr.rel (%p261) target = $region24
        $region23: #{rainnet_forward.1} parent=11 // pred_region
          _
        $region24: #{rainnet_forward.1} parent=11 // pred_fallthru
          _
        // Predicated region
        $region25: #{rainnet_forward.1} parent=11 // pred_check
          %p264 = pneg %p130
        $region26: #{rainnet_forward.1} parent=11 // pred_check_branch
          %266 = sbr.rel (%p264) target = $region28
        $region27: #{rainnet_forward.1} parent=11 // pred_region
          _
        $region28: #{rainnet_forward.1} parent=11 // pred_fallthru
          _
        // Predicated region
        $region29: #{rainnet_forward.1} parent=11 // pred_check
          %p267 = pneg %p151
        $region30: #{rainnet_forward.1} parent=11 // pred_check_branch
          %269 = sbr.rel (%p267) target = $region32
        $region31: #{rainnet_forward.1} parent=11 // pred_region
          _
        $region32: #{rainnet_forward.1} parent=11 // pred_fallthru
          _
        // Predicated region
        $region33: #{rainnet_forward.1} parent=11 // pred_check
          %p270 = pneg %p172
        $region34: #{rainnet_forward.1} parent=11 // pred_check_branch
          %272 = sbr.rel (%p270) target = $region36
        $region35: #{rainnet_forward.1} parent=11 // pred_region
          _
        $region36: #{rainnet_forward.1} parent=11 // pred_fallthru
          _
        // Predicated region
        $region37: #{rainnet_forward.1} parent=11 // pred_check
          %p273 = pneg %p193
        $region38: #{rainnet_forward.1} parent=11 // pred_check_branch
          %275 = sbr.rel (%p273) target = $region40
        $region39: #{rainnet_forward.1} parent=11 // pred_region
          _
        $region40: #{rainnet_forward.1} parent=11 // pred_fallthru
          _
        // Predicated region
        $region41: #{rainnet_forward.1} parent=11 // pred_check
          %p276 = pneg %p214
        $region42: #{rainnet_forward.1} parent=11 // pred_check_branch
          %278 = sbr.rel (%p276) target = $region44
        $region43: #{rainnet_forward.1} parent=11 // pred_region
          _
        $region44: #{rainnet_forward.1} parent=11 // pred_fallthru
          _
      $region12: #{rainnet_forward.1} parent=5 // pred_fallthru
        _
      %p279 = scmp.lt.s32.totalorder %s20, 2
      // Predicated region
      $region45: #{rainnet_forward.1} parent=5 // pred_check
        %p280 = pneg %p279
      $region46: #{rainnet_forward.1} parent=5 // pred_check_branch
        %282 = sbr.rel (%p280) target = $region48
      $region47: #{rainnet_forward.1} parent=5 // pred_region
        // Predicated region
        $region49: #{rainnet_forward.1} parent=47 // pred_check
          %p283 = pneg %p40
        $region50: #{rainnet_forward.1} parent=47 // pred_check_branch
          %285 = sbr.rel (%p283) target = $region52
        $region51: #{rainnet_forward.1} parent=47 // pred_region
          %s286 = smul.u32 64, %s20
          %s287 = ssub.s32 125, %s286
          %p288 = scmp.lt.s32.totalorder %s287, 64
          %s289 = scalar_select %p288, %s287, 64
          %s290 = smul.u32 128, %s289
          %p291 = scmp.lt.s32.totalorder %s286, 124
          %s292 = scalar_select %p291, %s286, 124
          %s293 = smul.addr %s292, 8
          %s294 = scalar_lea.vmem %s0, %s293
          %s295 = smul.u32 64, %s20
          %s296 = ssub.s32 125, %s295
          %p297 = scmp.lt.s32.totalorder %s296, 64
          %s298 = scalar_select %p297, %s296, 64
          %s299 = smul.u32 128, %s298
        $region52: #{rainnet_forward.1} parent=47 // pred_fallthru
          _
      $region48: #{rainnet_forward.1} parent=5 // pred_fallthru
        _
      %p300 = scmp.le.s32.totalorder 1, %s20
      %p301 = scmp.lt.s32.totalorder %s20, 3
      %p302 = pnand %p300, %p301
      %p303 = pneg %p302
      // Predicated region
      $region53: #{rainnet_forward.1} parent=5 // pred_check
        _
      $region54: #{rainnet_forward.1} parent=5 // pred_check_branch
        %305 = sbr.rel (%p302) target = $region56
      $region55: #{rainnet_forward.1} parent=5 // pred_region
        %s306 = ssub.s32 %s20, 1
        %s307 = smul.u32 64, %s25
        %s308 = ssub.s32 125, %s307
        %p309 = scmp.lt.s32.totalorder %s308, 64
        %s310 = scalar_select %p309, %s308, 64
        %s311 = smul.u32 128, %s310
        %p312 = scmp.lt.s32.totalorder %s307, 124
        %s313 = scalar_select %p312, %s307, 124
        %s314 = smul.addr %s313, 8
        %s315 = scalar_lea.vmem %s0, %s314
        %p316 = pneg %p46
        %p317 = pneg %p43
        %p318 = pneg %p67
        %p319 = pneg %p64
        %p320 = pneg %p88
        %p321 = pneg %p85
        %p322 = pneg %p109
        %p323 = pneg %p106
        %p324 = pneg %p130
        %p325 = pneg %p127
        %p326 = pneg %p151
        %p327 = pneg %p148
        %p328 = pneg %p172
        %p329 = pneg %p169
        %p330 = pneg %p193
        %p331 = pneg %p190
        %p332 = pneg %p214
        %p333 = pneg %p211
        %p334 = pneg %p240
        %p335 = pneg %p237
        %s336 = sand.u32 %s227, 1
        %s337 = scalar_lea.sflag [#allocation4], %s336
        %s338 = sand.u32 %s227, 1
        %s339 = smul.addr %s338, 4
        %s340 = scalar_lea.vmem [#allocation3], %s339
        %s341 = smul.u32 64, %s25
        %s342 = ssub.s32 125, %s341
        %p343 = scmp.lt.s32.totalorder %s342, 64
        %s344 = scalar_select %p343, %s342, 64
        %s345 = smul.u32 128, %s344
        %p346 = scmp.lt.s32.totalorder %s341, 124
        %s347 = scalar_select %p346, %s341, 124
        %s348 = smul.addr %s347, 8
        %s349 = scalar_lea.vmem %s0, %s348
        %s350 = smul.u32 64, %s25
        %s351 = ssub.s32 125, %s350
        %p352 = scmp.lt.s32.totalorder %s351, 64
        %s353 = scalar_select %p352, %s351, 64
        %s354 = smul.u32 128, %s353
        %s355 = smul.u32 4, %s25
        %v357 = vld [vmem:[%s349] sm:$0xff]
        %v358 = vld [vmem:[%s349 + $0x8] sm:$0xff]
        %v359 = vld [vmem:[%s349 + $0x10] sm:$0xff]
        %v360 = vld [vmem:[%s349 + $0x18] sm:$0xff]
        %v361 = vld [vmem:[%s349 + $0x20] sm:$0xff]
        %v362 = vld [vmem:[%s349 + $0x28] sm:$0xff]
        %v363 = vld [vmem:[%s349 + $0x30] sm:$0xff]
        %v364 = vld [vmem:[%s349 + $0x38] sm:$0xff]
        %v365 = vld [vmem:[%s349 + $0x40] sm:$0xff]
        %v366 = vld [vmem:[%s349 + $0x48] sm:$0xff]
        %v367 = vld [vmem:[%s349 + $0x50] sm:$0xff]
        %v368 = vld [vmem:[%s349 + $0x58] sm:$0xff]
        %v369 = vld [vmem:[%s349 + $0x60] sm:$0xff]
        %v370 = vld [vmem:[%s349 + $0x68] sm:$0xff]
        %v371 = vld [vmem:[%s349 + $0x70] sm:$0xff]
        %v372 = vld [vmem:[%s349 + $0x78] sm:$0xff]
        %v373 = vld [vmem:[%s349 + $0x80] sm:$0xff]
        %v374 = vld [vmem:[%s349 + $0x88] sm:$0xff]
        %v375 = vld [vmem:[%s349 + $0x90] sm:$0xff]
        %v376 = vld [vmem:[%s349 + $0x98] sm:$0xff]
        %v377 = vld [vmem:[%s349 + $0xa0] sm:$0xff]
        %v378 = vld [vmem:[%s349 + $0xa8] sm:$0xff]
        %v379 = vld [vmem:[%s349 + $0xb0] sm:$0xff]
        %v380 = vld [vmem:[%s349 + $0xb8] sm:$0xff]
        %v381 = vld [vmem:[%s349 + $0xc0] sm:$0xff]
        %v382 = vld [vmem:[%s349 + $0xc8] sm:$0xff]
        %v383 = vld [vmem:[%s349 + $0xd0] sm:$0xff]
        %v384 = vld [vmem:[%s349 + $0xd8] sm:$0xff]
        %v385 = vld [vmem:[%s349 + $0xe0] sm:$0xff]
        %v386 = vld [vmem:[%s349 + $0xe8] sm:$0xff]
        %v387 = vld [vmem:[%s349 + $0xf0] sm:$0xff]
        %v388 = vld [vmem:[%s349 + $0xf8] sm:$0xff]
        %v389 = vld [vmem:[%s349 + $0x100] sm:$0xff]
        %v390 = vld [vmem:[%s349 + $0x108] sm:$0xff]
        %v391 = vld [vmem:[%s349 + $0x110] sm:$0xff]
        %v392 = vld [vmem:[%s349 + $0x118] sm:$0xff]
        %v393 = vld [vmem:[%s349 + $0x120] sm:$0xff]
        %v394 = vld [vmem:[%s349 + $0x128] sm:$0xff]
        %v395 = vld [vmem:[%s349 + $0x130] sm:$0xff]
        %v396 = vld [vmem:[%s349 + $0x138] sm:$0xff]
        %v397 = vld [vmem:[%s349 + $0x140] sm:$0xff]
        %v398 = vld [vmem:[%s349 + $0x148] sm:$0xff]
        %v399 = vld [vmem:[%s349 + $0x150] sm:$0xff]
        %v400 = vld [vmem:[%s349 + $0x158] sm:$0xff]
        %v401 = vld [vmem:[%s349 + $0x160] sm:$0xff]
        %v402 = vld [vmem:[%s349 + $0x168] sm:$0xff]
        %v403 = vld [vmem:[%s349 + $0x170] sm:$0xff]
        %v404 = vld [vmem:[%s349 + $0x178] sm:$0xff]
        %v405 = vld [vmem:[%s349 + $0x180] sm:$0xff]
        %v406 = vld [vmem:[%s349 + $0x188] sm:$0xff]
        %v407 = vld [vmem:[%s349 + $0x190] sm:$0xff]
        %v408 = vld [vmem:[%s349 + $0x198] sm:$0xff]
        %v409 = vld [vmem:[%s349 + $0x1a0] sm:$0xff]
        %v410 = vld [vmem:[%s349 + $0x1a8] sm:$0xff]
        %v411 = vld [vmem:[%s349 + $0x1b0] sm:$0xff]
        %v412 = vld [vmem:[%s349 + $0x1b8] sm:$0xff]
        %v413 = vld [vmem:[%s349 + $0x1c0] sm:$0xff]
        %v414 = vld [vmem:[%s349 + $0x1c8] sm:$0xff]
        %v415 = vld [vmem:[%s349 + $0x1d0] sm:$0xff]
        %v416 = vld [vmem:[%s349 + $0x1d8] sm:$0xff]
        %v417 = vld [vmem:[%s349 + $0x1e0] sm:$0xff]
        %v418 = vld [vmem:[%s349 + $0x1e8] sm:$0xff]
        %v419 = vld [vmem:[%s349 + $0x1f0] sm:$0xff]
        %v420 = vld [vmem:[%s349 + $0x1f8] sm:$0xff]
        %v421 = vpack.c.bf16 %v358, %v357
        %v422 = vpack.c.bf16 %v360, %v359
        %v423 = vpack.c.bf16 %v362, %v361
        %v424 = vpack.c.bf16 %v364, %v363
        %v425 = vpack.c.bf16 %v366, %v365
        %v426 = vpack.c.bf16 %v368, %v367
        %v427 = vpack.c.bf16 %v370, %v369
        %v428 = vpack.c.bf16 %v372, %v371
        %v429 = vpack.c.bf16 %v374, %v373
        %v430 = vpack.c.bf16 %v376, %v375
        %v431 = vpack.c.bf16 %v378, %v377
        %v432 = vpack.c.bf16 %v380, %v379
        %v433 = vpack.c.bf16 %v382, %v381
        %v434 = vpack.c.bf16 %v384, %v383
        %v435 = vpack.c.bf16 %v386, %v385
        %v436 = vpack.c.bf16 %v388, %v387
        %v437 = vpack.c.bf16 %v390, %v389
        %v438 = vpack.c.bf16 %v392, %v391
        %v439 = vpack.c.bf16 %v394, %v393
        %v440 = vpack.c.bf16 %v396, %v395
        %v441 = vpack.c.bf16 %v398, %v397
        %v442 = vpack.c.bf16 %v400, %v399
        %v443 = vpack.c.bf16 %v402, %v401
        %v444 = vpack.c.bf16 %v404, %v403
        %v445 = vpack.c.bf16 %v406, %v405
        %v446 = vpack.c.bf16 %v408, %v407
        %v447 = vpack.c.bf16 %v410, %v409
        %v448 = vpack.c.bf16 %v412, %v411
        %v449 = vpack.c.bf16 %v414, %v413
        %v450 = vpack.c.bf16 %v416, %v415
        %v451 = vpack.c.bf16 %v418, %v417
        %v452 = vpack.c.bf16 %v420, %v419
        %v453 = vld [vmem:[%s1] sm:$0xf]
        %v454 = vld [vmem:[%s1 + $0x4] sm:$0xf]
        %v455 = vld [vmem:[%s1 + $0x8] sm:$0xf]
        %v456 = vld [vmem:[%s1 + $0xc] sm:$0xf]
        %v457 = vld [vmem:[%s1 + $0x10] sm:$0xf]
        %v458 = vld [vmem:[%s1 + $0x14] sm:$0xf]
        %v459 = vld [vmem:[%s1 + $0x18] sm:$0xf]
        %v460 = vld [vmem:[%s1 + $0x1c] sm:$0xf]
        %v461 = vld [vmem:[%s1 + $0x20] sm:$0xf]
        %v462 = vld [vmem:[%s1 + $0x24] sm:$0xf]
        %v463 = vld [vmem:[%s1 + $0x28] sm:$0xf]
        %v464 = vld [vmem:[%s1 + $0x2c] sm:$0xf]
        %v465 = vld [vmem:[%s1 + $0x30] sm:$0xf]
        %v466 = vld [vmem:[%s1 + $0x34] sm:$0xf]
        %v467 = vld [vmem:[%s1 + $0x38] sm:$0xf]
        %v468 = vld [vmem:[%s1 + $0x3c] sm:$0xf]
        %v469 = vld [vmem:[%s2] sm:$0xff]
        %v470 = vld [vmem:[%s2 + $0x8] sm:$0xff]
        %v471 = vld [vmem:[%s2 + $0x10] sm:$0xff]
        %v472 = vld [vmem:[%s2 + $0x18] sm:$0xff]
        %v473 = vld [vmem:[%s2 + $0x20] sm:$0xff]
        %v474 = vld [vmem:[%s2 + $0x28] sm:$0xff]
        %v475 = vld [vmem:[%s2 + $0x30] sm:$0xff]
        %v476 = vld [vmem:[%s2 + $0x38] sm:$0xff]
        %v477 = vld [vmem:[%s2 + $0x40] sm:$0xff]
        %v478 = vld [vmem:[%s2 + $0x48] sm:$0xff]
        %v479 = vld [vmem:[%s2 + $0x50] sm:$0xff]
        %v480 = vld [vmem:[%s2 + $0x58] sm:$0xff]
        %v481 = vld [vmem:[%s2 + $0x60] sm:$0xff]
        %v482 = vld [vmem:[%s2 + $0x68] sm:$0xff]
        %v483 = vld [vmem:[%s2 + $0x70] sm:$0xff]
        %v484 = vld [vmem:[%s2 + $0x78] sm:$0xff]
        %486 = vset.pattern.permute.xlu0 0
        %487 = vperm.xlu0 %486, %v469
        %v488 = vpop.permute.xlu0 %487
        %491 = vset.pattern.permute.xlu0 0
        %492 = vperm.xlu0 %491, %v470
        %v493 = vpop.permute.xlu0 %492
        %496 = vset.pattern.permute.xlu0 0
        %497 = vperm.xlu0 %496, %v471
        %v498 = vpop.permute.xlu0 %497
        %501 = vset.pattern.permute.xlu0 0
        %502 = vperm.xlu0 %501, %v472
        %v503 = vpop.permute.xlu0 %502
        %506 = vset.pattern.permute.xlu0 0
        %507 = vperm.xlu0 %506, %v473
        %v508 = vpop.permute.xlu0 %507
        %511 = vset.pattern.permute.xlu0 0
        %512 = vperm.xlu0 %511, %v474
        %v513 = vpop.permute.xlu0 %512
        %516 = vset.pattern.permute.xlu0 0
        %517 = vperm.xlu0 %516, %v475
        %v518 = vpop.permute.xlu0 %517
        %521 = vset.pattern.permute.xlu0 0
        %522 = vperm.xlu0 %521, %v476
        %v523 = vpop.permute.xlu0 %522
        %526 = vset.pattern.permute.xlu0 0
        %527 = vperm.xlu0 %526, %v477
        %v528 = vpop.permute.xlu0 %527
        %531 = vset.pattern.permute.xlu0 0
        %532 = vperm.xlu0 %531, %v478
        %v533 = vpop.permute.xlu0 %532
        %536 = vset.pattern.permute.xlu0 0
        %537 = vperm.xlu0 %536, %v479
        %v538 = vpop.permute.xlu0 %537
        %541 = vset.pattern.permute.xlu0 0
        %542 = vperm.xlu0 %541, %v480
        %v543 = vpop.permute.xlu0 %542
        %546 = vset.pattern.permute.xlu0 0
        %547 = vperm.xlu0 %546, %v481
        %v548 = vpop.permute.xlu0 %547
        %551 = vset.pattern.permute.xlu0 0
        %552 = vperm.xlu0 %551, %v482
        %v553 = vpop.permute.xlu0 %552
        %556 = vset.pattern.permute.xlu0 0
        %557 = vperm.xlu0 %556, %v483
        %v558 = vpop.permute.xlu0 %557
        %561 = vset.pattern.permute.xlu0 0
        %562 = vperm.xlu0 %561, %v484
        %v563 = vpop.permute.xlu0 %562
        %v581 = vunpack.c.l.b16 %v453
        %v582 = vunpack.c.l.b16 %v454
        %v583 = vunpack.c.l.b16 %v455
        %v584 = vunpack.c.l.b16 %v456
        %v585 = vunpack.c.l.b16 %v457
        %v586 = vunpack.c.l.b16 %v458
        %v587 = vunpack.c.l.b16 %v459
        %v588 = vunpack.c.l.b16 %v460
        %v589 = vunpack.c.l.b16 %v461
        %v590 = vunpack.c.l.b16 %v462
        %v591 = vunpack.c.l.b16 %v463
        %v592 = vunpack.c.l.b16 %v464
        %v593 = vunpack.c.l.b16 %v465
        %v594 = vunpack.c.l.b16 %v466
        %v595 = vunpack.c.l.b16 %v467
        %v596 = vunpack.c.l.b16 %v468
        %v597 = vpack.c.b16 %v582, %v581
        %v598 = vpack.c.b16 %v584, %v583
        %v599 = vpack.c.b16 %v586, %v585
        %v600 = vpack.c.b16 %v588, %v587
        %v601 = vpack.c.b16 %v590, %v589
        %v602 = vpack.c.b16 %v592, %v591
        %v603 = vpack.c.b16 %v594, %v593
        %v604 = vpack.c.b16 %v596, %v595
        %vm605 = vcmask 261120
        %v607 = vsel %vm605, %v597, 0
        %v610 = vsel %vm605, %v598, 0
        %v613 = vsel %vm605, %v599, 0
        %v616 = vsel %vm605, %v600, 0
        %v619 = vsel %vm605, %v601, 0
        %v622 = vsel %vm605, %v602, 0
        %v625 = vsel %vm605, %v603, 0
        %v628 = vsel %vm605, %v604, 0
        %v631 = vsel %vm605, %v421, 0
        %v634 = vsel %vm605, %v422, 0
        %v637 = vsel %vm605, %v423, 0
        %v640 = vsel %vm605, %v424, 0
        %v643 = vsel %vm605, %v425, 0
        %v646 = vsel %vm605, %v426, 0
        %v649 = vsel %vm605, %v427, 0
        %v652 = vsel %vm605, %v428, 0
        %v655 = vsel %vm605, %v429, 0
        %v658 = vsel %vm605, %v430, 0
        %v661 = vsel %vm605, %v431, 0
        %v664 = vsel %vm605, %v432, 0
        %v667 = vsel %vm605, %v433, 0
        %v670 = vsel %vm605, %v434, 0
        %v673 = vsel %vm605, %v435, 0
        %v676 = vsel %vm605, %v436, 0
        %v679 = vsel %vm605, %v437, 0
        %v682 = vsel %vm605, %v438, 0
        %v685 = vsel %vm605, %v439, 0
        %v688 = vsel %vm605, %v440, 0
        %v691 = vsel %vm605, %v441, 0
        %v694 = vsel %vm605, %v442, 0
        %v697 = vsel %vm605, %v443, 0
        %v700 = vsel %vm605, %v444, 0
        %v703 = vsel %vm605, %v445, 0
        %v706 = vsel %vm605, %v446, 0
        %v709 = vsel %vm605, %v447, 0
        %v712 = vsel %vm605, %v448, 0
        %v715 = vsel %vm605, %v449, 0
        %v718 = vsel %vm605, %v450, 0
        %v721 = vsel %vm605, %v451, 0
        %v724 = vsel %vm605, %v452, 0
        %726 = vmatprep.subr.bf16.mxu0 0
        %727 = vmatpush1.bf16.xpose.msra.mxu0 %v631
        %728 = vmatprep.subr.bf16.mxu0 0
        %729 = vmatpush1.bf16.xpose.msra.mxu0 %v634
        %730 = vmatprep.subr.bf16.mxu0 0
        %731 = vmatpush1.bf16.xpose.msra.mxu0 %v637
        %732 = vmatprep.subr.bf16.mxu0 0
        %733 = vmatpush1.bf16.xpose.msra.mxu0 %v640
        %734 = vmatprep.subr.bf16.mxu0 0
        %735 = vmatpush1.bf16.xpose.msra.mxu0 %v643
        %736 = vmatprep.subr.bf16.mxu0 0
        %737 = vmatpush1.bf16.xpose.msra.mxu0 %v646
        %738 = vmatprep.subr.bf16.mxu0 0
        %739 = vmatpush1.bf16.xpose.msra.mxu0 %v649
        %740 = vmatprep.subr.bf16.mxu0 0
        %741 = vmatpush1.bf16.xpose.msra.mxu0 %v652
        %742 = vmatprep.subr.bf16.mxu0 0
        %743 = vmatpush1.bf16.xpose.msra.mxu0 %v655
        %744 = vmatprep.subr.bf16.mxu0 0
        %745 = vmatpush1.bf16.xpose.msra.mxu0 %v658
        %746 = vmatprep.subr.bf16.mxu0 0
        %747 = vmatpush1.bf16.xpose.msra.mxu0 %v661
        %748 = vmatprep.subr.bf16.mxu0 0
        %749 = vmatpush1.bf16.xpose.msra.mxu0 %v664
        %750 = vmatprep.subr.bf16.mxu0 0
        %751 = vmatpush1.bf16.xpose.msra.mxu0 %v667
        %752 = vmatprep.subr.bf16.mxu0 0
        %753 = vmatpush1.bf16.xpose.msra.mxu0 %v670
        %754 = vmatprep.subr.bf16.mxu0 0
        %755 = vmatpush1.bf16.xpose.msra.mxu0 %v673
        %756 = vmatprep.subr.bf16.mxu0 0
        %757 = vmatpush1.bf16.xpose.msra.mxu0 %v676
        %758 = vmatprep.mubr.bf16.mxu0 0
        %759 = vmatmul.mubr.bf16.gmra.mrb[0].mxu0 %v607
        %v760 = vpop.f32.mrb[0].mxu0
        %v761 = vadd.f32 %v488, %v760
        %v762 = vpop.f32.mrb[0].mxu0
        %v763 = vadd.f32 %v488, %v762
        %v764 = vpop.f32.mrb[0].mxu0
        %v765 = vadd.f32 %v493, %v764
        %v766 = vpop.f32.mrb[0].mxu0
        %v767 = vadd.f32 %v493, %v766
        %768 = vmatprep.mubr.bf16.mxu0 0
        %769 = vmatmul.mubr.bf16.gmra.mrb[0].mxu0 %v610
        %v770 = vpop.f32.mrb[0].mxu0
        %v771 = vadd.f32 %v498, %v770
        %v772 = vpop.f32.mrb[0].mxu0
        %v773 = vadd.f32 %v498, %v772
        %v774 = vpop.f32.mrb[0].mxu0
        %v775 = vadd.f32 %v503, %v774
        %v776 = vpop.f32.mrb[0].mxu0
        %v777 = vadd.f32 %v503, %v776
        %778 = vmatprep.mubr.bf16.mxu0 0
        %779 = vmatmul.mubr.bf16.gmra.mrb[0].mxu0 %v613
        %v780 = vpop.f32.mrb[0].mxu0
        %v781 = vadd.f32 %v508, %v780
        %v782 = vpop.f32.mrb[0].mxu0
        %v783 = vadd.f32 %v508, %v782
        %v784 = vpop.f32.mrb[0].mxu0
        %v785 = vadd.f32 %v513, %v784
        %v786 = vpop.f32.mrb[0].mxu0
        %v787 = vadd.f32 %v513, %v786
        %788 = vmatprep.mubr.bf16.mxu0 0
        %789 = vmatmul.mubr.bf16.gmra.mrb[0].mxu0 %v616
        %v790 = vpop.f32.mrb[0].mxu0
        %v791 = vadd.f32 %v518, %v790
        %v792 = vpop.f32.mrb[0].mxu0
        %v793 = vadd.f32 %v518, %v792
        %v794 = vpop.f32.mrb[0].mxu0
        %v795 = vadd.f32 %v523, %v794
        %v796 = vpop.f32.mrb[0].mxu0
        %v797 = vadd.f32 %v523, %v796
        %798 = vmatprep.mubr.bf16.mxu0 0
        %799 = vmatmul.mubr.bf16.gmra.mrb[0].mxu0 %v619
        %v800 = vpop.f32.mrb[0].mxu0
        %v801 = vadd.f32 %v528, %v800
        %v802 = vpop.f32.mrb[0].mxu0
        %v803 = vadd.f32 %v528, %v802
        %v804 = vpop.f32.mrb[0].mxu0
        %v805 = vadd.f32 %v533, %v804
        %v806 = vpop.f32.mrb[0].mxu0
        %v807 = vadd.f32 %v533, %v806
        %808 = vmatprep.mubr.bf16.mxu0 0
        %809 = vmatmul.mubr.bf16.gmra.mrb[0].mxu0 %v622
        %v810 = vpop.f32.mrb[0].mxu0
        %v811 = vadd.f32 %v538, %v810
        %v812 = vpop.f32.mrb[0].mxu0
        %v813 = vadd.f32 %v538, %v812
        %v814 = vpop.f32.mrb[0].mxu0
        %v815 = vadd.f32 %v543, %v814
        %v816 = vpop.f32.mrb[0].mxu0
        %v817 = vadd.f32 %v543, %v816
        %818 = vmatprep.mubr.bf16.mxu0 0
        %819 = vmatmul.mubr.bf16.gmra.mrb[0].mxu0 %v625
        %v820 = vpop.f32.mrb[0].mxu0
        %v821 = vadd.f32 %v548, %v820
        %v822 = vpop.f32.mrb[0].mxu0
        %v823 = vadd.f32 %v548, %v822
        %v824 = vpop.f32.mrb[0].mxu0
        %v825 = vadd.f32 %v553, %v824
        %v826 = vpop.f32.mrb[0].mxu0
        %v827 = vadd.f32 %v553, %v826
        %828 = vmatprep.mubr.bf16.mxu0 0
        %829 = vmatmul.mubr.bf16.gmra.mrb[0].mxu0 %v628
        %v830 = vpop.f32.mrb[0].mxu0
        %v831 = vadd.f32 %v558, %v830
        %v832 = vpop.f32.mrb[0].mxu0
        %v833 = vadd.f32 %v558, %v832
        %v834 = vpop.f32.mrb[0].mxu0
        %v835 = vadd.f32 %v563, %v834
        %v836 = vpop.f32.mrb[0].mxu0
        %v837 = vadd.f32 %v563, %v836
        %838 = vdwg.mxu0
        %839 = vmatprep.subr.bf16.mxu0 0
        %840 = vmatpush1.bf16.xpose.msra.mxu0 %v679
        %841 = vmatprep.subr.bf16.mxu0 0
        %842 = vmatpush1.bf16.xpose.msra.mxu0 %v682
        %843 = vmatprep.subr.bf16.mxu0 0
        %844 = vmatpush1.bf16.xpose.msra.mxu0 %v685
        %845 = vmatprep.subr.bf16.mxu0 0
        %846 = vmatpush1.bf16.xpose.msra.mxu0 %v688
        %847 = vmatprep.subr.bf16.mxu0 0
        %848 = vmatpush1.bf16.xpose.msra.mxu0 %v691
        %849 = vmatprep.subr.bf16.mxu0 0
        %850 = vmatpush1.bf16.xpose.msra.mxu0 %v694
        %851 = vmatprep.subr.bf16.mxu0 0
        %852 = vmatpush1.bf16.xpose.msra.mxu0 %v697
        %853 = vmatprep.subr.bf16.mxu0 0
        %854 = vmatpush1.bf16.xpose.msra.mxu0 %v700
        %855 = vmatprep.subr.bf16.mxu0 0
        %856 = vmatpush1.bf16.xpose.msra.mxu0 %v703
        %857 = vmatprep.subr.bf16.mxu0 0
        %858 = vmatpush1.bf16.xpose.msra.mxu0 %v706
        %859 = vmatprep.subr.bf16.mxu0 0
        %860 = vmatpush1.bf16.xpose.msra.mxu0 %v709
        %861 = vmatprep.subr.bf16.mxu0 0
        %862 = vmatpush1.bf16.xpose.msra.mxu0 %v712
        %863 = vmatprep.subr.bf16.mxu0 0
        %864 = vmatpush1.bf16.xpose.msra.mxu0 %v715
        %865 = vmatprep.subr.bf16.mxu0 0
        %866 = vmatpush1.bf16.xpose.msra.mxu0 %v718
        %867 = vmatprep.subr.bf16.mxu0 0
        %868 = vmatpush1.bf16.xpose.msra.mxu0 %v721
        %869 = vmatprep.subr.bf16.mxu0 0
        %870 = vmatpush1.bf16.xpose.msra.mxu0 %v724
        %871 = vmatprep.mubr.bf16.mxu0 0
        %872 = vmatmul.mubr.bf16.gmra.mrb[0].mxu0 %v607
        %v873 = vpop.f32.mrb[0].mxu0
        %v874 = vadd.f32 %v488, %v873
        %v875 = vpop.f32.mrb[0].mxu0
        %v876 = vadd.f32 %v488, %v875
        %v877 = vpop.f32.mrb[0].mxu0
        %v878 = vadd.f32 %v493, %v877
        %v879 = vpop.f32.mrb[0].mxu0
        %v880 = vadd.f32 %v493, %v879
        %881 = vmatprep.mubr.bf16.mxu0 0
        %882 = vmatmul.mubr.bf16.gmra.mrb[0].mxu0 %v610
        %v883 = vpop.f32.mrb[0].mxu0
        %v884 = vadd.f32 %v498, %v883
        %v885 = vpop.f32.mrb[0].mxu0
        %v886 = vadd.f32 %v498, %v885
        %v887 = vpop.f32.mrb[0].mxu0
        %v888 = vadd.f32 %v503, %v887
        %v889 = vpop.f32.mrb[0].mxu0
        %v890 = vadd.f32 %v503, %v889
        %891 = vmatprep.mubr.bf16.mxu0 0
        %892 = vmatmul.mubr.bf16.gmra.mrb[0].mxu0 %v613
        %v893 = vpop.f32.mrb[0].mxu0
        %v894 = vadd.f32 %v508, %v893
        %v895 = vpop.f32.mrb[0].mxu0
        %v896 = vadd.f32 %v508, %v895
        %v897 = vpop.f32.mrb[0].mxu0
        %v898 = vadd.f32 %v513, %v897
        %v899 = vpop.f32.mrb[0].mxu0
        %v900 = vadd.f32 %v513, %v899
        %901 = vmatprep.mubr.bf16.mxu0 0
        %902 = vmatmul.mubr.bf16.gmra.mrb[0].mxu0 %v616
        %v903 = vpop.f32.mrb[0].mxu0
        %v904 = vadd.f32 %v518, %v903
        %v905 = vpop.f32.mrb[0].mxu0
        %v906 = vadd.f32 %v518, %v905
        %v907 = vpop.f32.mrb[0].mxu0
        %v908 = vadd.f32 %v523, %v907
        %v909 = vpop.f32.mrb[0].mxu0
        %v910 = vadd.f32 %v523, %v909
        %911 = vmatprep.mubr.bf16.mxu0 0
        %912 = vmatmul.mubr.bf16.gmra.mrb[0].mxu0 %v619
        %v913 = vpop.f32.mrb[0].mxu0
        %v914 = vadd.f32 %v528, %v913
        %v915 = vpop.f32.mrb[0].mxu0
        %v916 = vadd.f32 %v528, %v915
        %v917 = vpop.f32.mrb[0].mxu0
        %v918 = vadd.f32 %v533, %v917
        %v919 = vpop.f32.mrb[0].mxu0
        %v920 = vadd.f32 %v533, %v919
        %921 = vmatprep.mubr.bf16.mxu0 0
        %922 = vmatmul.mubr.bf16.gmra.mrb[0].mxu0 %v622
        %v923 = vpop.f32.mrb[0].mxu0
        %v924 = vadd.f32 %v538, %v923
        %v925 = vpop.f32.mrb[0].mxu0
        %v926 = vadd.f32 %v538, %v925
        %v927 = vpop.f32.mrb[0].mxu0
        %v928 = vadd.f32 %v543, %v927
        %v929 = vpop.f32.mrb[0].mxu0
        %v930 = vadd.f32 %v543, %v929
        %931 = vmatprep.mubr.bf16.mxu0 0
        %932 = vmatmul.mubr.bf16.gmra.mrb[0].mxu0 %v625
        %v933 = vpop.f32.mrb[0].mxu0
        %v934 = vadd.f32 %v548, %v933
        %v935 = vpop.f32.mrb[0].mxu0
        %v936 = vadd.f32 %v548, %v935
        %v937 = vpop.f32.mrb[0].mxu0
        %v938 = vadd.f32 %v553, %v937
        %v939 = vpop.f32.mrb[0].mxu0
        %v940 = vadd.f32 %v553, %v939
        %941 = vmatprep.mubr.bf16.mxu0 0
        %942 = vmatmul.mubr.bf16.gmra.mrb[0].mxu0 %v628
        %v943 = vpop.f32.mrb[0].mxu0
        %v944 = vadd.f32 %v558, %v943
        %v945 = vpop.f32.mrb[0].mxu0
        %v946 = vadd.f32 %v558, %v945
        %v947 = vpop.f32.mrb[0].mxu0
        %v948 = vadd.f32 %v563, %v947
        %v949 = vpop.f32.mrb[0].mxu0
        %v950 = vadd.f32 %v563, %v949
        %951 = vdwg.mxu0
        %v952 = vmax.f32 %v761, 0.0
        %v953 = vmax.f32 %v763, 0.0
        %v954 = vmax.f32 %v874, 0.0
        %v955 = vmax.f32 %v876, 0.0
        %v956 = vmax.f32 %v765, 0.0
        %v957 = vmax.f32 %v767, 0.0
        %v958 = vmax.f32 %v878, 0.0
        %v959 = vmax.f32 %v880, 0.0
        %v960 = vmax.f32 %v771, 0.0
        %v961 = vmax.f32 %v773, 0.0
        %v962 = vmax.f32 %v884, 0.0
        %v963 = vmax.f32 %v886, 0.0
        %v964 = vmax.f32 %v775, 0.0
        %v965 = vmax.f32 %v777, 0.0
        %v966 = vmax.f32 %v888, 0.0
        %v967 = vmax.f32 %v890, 0.0
        %v968 = vmax.f32 %v781, 0.0
        %v969 = vmax.f32 %v783, 0.0
        %v970 = vmax.f32 %v894, 0.0
        %v971 = vmax.f32 %v896, 0.0
        %v972 = vmax.f32 %v785, 0.0
        %v973 = vmax.f32 %v787, 0.0
        %v974 = vmax.f32 %v898, 0.0
        %v975 = vmax.f32 %v900, 0.0
        %v976 = vmax.f32 %v791, 0.0
        %v977 = vmax.f32 %v793, 0.0
        %v978 = vmax.f32 %v904, 0.0
        %v979 = vmax.f32 %v906, 0.0
        %v980 = vmax.f32 %v795, 0.0
        %v981 = vmax.f32 %v797, 0.0
        %v982 = vmax.f32 %v908, 0.0
        %v983 = vmax.f32 %v910, 0.0
        %v984 = vmax.f32 %v801, 0.0
        %v985 = vmax.f32 %v803, 0.0
        %v986 = vmax.f32 %v914, 0.0
        %v987 = vmax.f32 %v916, 0.0
        %v988 = vmax.f32 %v805, 0.0
        %v989 = vmax.f32 %v807, 0.0
        %v990 = vmax.f32 %v918, 0.0
        %v991 = vmax.f32 %v920, 0.0
        %v992 = vmax.f32 %v811, 0.0
        %v993 = vmax.f32 %v813, 0.0
        %v994 = vmax.f32 %v924, 0.0
        %v995 = vmax.f32 %v926, 0.0
        %v996 = vmax.f32 %v815, 0.0
        %v997 = vmax.f32 %v817, 0.0
        %v998 = vmax.f32 %v928, 0.0
        %v999 = vmax.f32 %v930, 0.0
        %v1000 = vmax.f32 %v821, 0.0
        %v1001 = vmax.f32 %v823, 0.0
        %v1002 = vmax.f32 %v934, 0.0
        %v1003 = vmax.f32 %v936, 0.0
        %v1004 = vmax.f32 %v825, 0.0
        %v1005 = vmax.f32 %v827, 0.0
        %v1006 = vmax.f32 %v938, 0.0
        %v1007 = vmax.f32 %v940, 0.0
        %v1008 = vmax.f32 %v831, 0.0
        %v1009 = vmax.f32 %v833, 0.0
        %v1010 = vmax.f32 %v944, 0.0
        %v1011 = vmax.f32 %v946, 0.0
        %v1012 = vmax.f32 %v835, 0.0
        %v1013 = vmax.f32 %v837, 0.0
        %v1014 = vmax.f32 %v948, 0.0
        %v1015 = vmax.f32 %v950, 0.0
        %v1016 = vpack.c.bf16 %v956, %v952
        %v1017 = vpack.c.bf16 %v957, %v953
        %v1018 = vpack.c.bf16 %v958, %v954
        %v1019 = vpack.c.bf16 %v959, %v955
        %v1020 = vpack.c.bf16 %v964, %v960
        %v1021 = vpack.c.bf16 %v965, %v961
        %v1022 = vpack.c.bf16 %v966, %v962
        %v1023 = vpack.c.bf16 %v967, %v963
        %v1024 = vpack.c.bf16 %v972, %v968
        %v1025 = vpack.c.bf16 %v973, %v969
        %v1026 = vpack.c.bf16 %v974, %v970
        %v1027 = vpack.c.bf16 %v975, %v971
        %v1028 = vpack.c.bf16 %v980, %v976
        %v1029 = vpack.c.bf16 %v981, %v977
        %v1030 = vpack.c.bf16 %v982, %v978
        %v1031 = vpack.c.bf16 %v983, %v979
        %v1032 = vpack.c.bf16 %v988, %v984
        %v1033 = vpack.c.bf16 %v989, %v985
        %v1034 = vpack.c.bf16 %v990, %v986
        %v1035 = vpack.c.bf16 %v991, %v987
        %v1036 = vpack.c.bf16 %v996, %v992
        %v1037 = vpack.c.bf16 %v997, %v993
        %v1038 = vpack.c.bf16 %v998, %v994
        %v1039 = vpack.c.bf16 %v999, %v995
        %v1040 = vpack.c.bf16 %v1004, %v1000
        %v1041 = vpack.c.bf16 %v1005, %v1001
        %v1042 = vpack.c.bf16 %v1006, %v1002
        %v1043 = vpack.c.bf16 %v1007, %v1003
        %v1044 = vpack.c.bf16 %v1012, %v1008
        %v1045 = vpack.c.bf16 %v1013, %v1009
        %v1046 = vpack.c.bf16 %v1014, %v1010
        %v1047 = vpack.c.bf16 %v1015, %v1011
        %v1048 = vld [vmem:[%s3] sm:$0xf]
        %v1049 = vld [vmem:[%s3 + $0x4] sm:$0xf]
        %v1050 = vld [vmem:[%s3 + $0x8] sm:$0xf]
        %v1051 = vld [vmem:[%s3 + $0xc] sm:$0xf]
        %v1052 = vld [vmem:[%s3 + $0x10] sm:$0xf]
        %v1053 = vld [vmem:[%s3 + $0x14] sm:$0xf]
        %v1054 = vld [vmem:[%s3 + $0x18] sm:$0xf]
        %v1055 = vld [vmem:[%s3 + $0x1c] sm:$0xf]
        %v1056 = vld [vmem:[%s4] sm:$0xff]
        %v1057 = vld [vmem:[%s4 + $0x8] sm:$0xff]
        %v1058 = vld [vmem:[%s4 + $0x10] sm:$0xff]
        %v1059 = vld [vmem:[%s4 + $0x18] sm:$0xff]
        %v1060 = vld [vmem:[%s4 + $0x20] sm:$0xff]
        %v1061 = vld [vmem:[%s4 + $0x28] sm:$0xff]
        %v1062 = vld [vmem:[%s4 + $0x30] sm:$0xff]
        %v1063 = vld [vmem:[%s4 + $0x38] sm:$0xff]
        %1065 = vset.pattern.permute.xlu0 0
        %1066 = vperm.xlu0 %1065, %v1056
        %v1067 = vpop.permute.xlu0 %1066
        %1070 = vset.pattern.permute.xlu0 0
        %1071 = vperm.xlu0 %1070, %v1057
        %v1072 = vpop.permute.xlu0 %1071
        %1075 = vset.pattern.permute.xlu0 0
        %1076 = vperm.xlu0 %1075, %v1058
        %v1077 = vpop.permute.xlu0 %1076
        %1080 = vset.pattern.permute.xlu0 0
        %1081 = vperm.xlu0 %1080, %v1059
        %v1082 = vpop.permute.xlu0 %1081
        %1085 = vset.pattern.permute.xlu0 0
        %1086 = vperm.xlu0 %1085, %v1060
        %v1087 = vpop.permute.xlu0 %1086
        %1090 = vset.pattern.permute.xlu0 0
        %1091 = vperm.xlu0 %1090, %v1061
        %v1092 = vpop.permute.xlu0 %1091
        %1095 = vset.pattern.permute.xlu0 0
        %1096 = vperm.xlu0 %1095, %v1062
        %v1097 = vpop.permute.xlu0 %1096
        %1100 = vset.pattern.permute.xlu0 0
        %1101 = vperm.xlu0 %1100, %v1063
        %v1102 = vpop.permute.xlu0 %1101
        %v1112 = vunpack.c.l.b16 %v1048
        %v1113 = vunpack.c.l.b16 %v1049
        %v1114 = vunpack.c.l.b16 %v1050
        %v1115 = vunpack.c.l.b16 %v1051
        %v1116 = vunpack.c.l.b16 %v1052
        %v1117 = vunpack.c.l.b16 %v1053
        %v1118 = vunpack.c.l.b16 %v1054
        %v1119 = vunpack.c.l.b16 %v1055
        %v1120 = vpack.c.b16 %v1113, %v1112
        %v1121 = vpack.c.b16 %v1115, %v1114
        %v1122 = vpack.c.b16 %v1117, %v1116
        %v1123 = vpack.c.b16 %v1119, %v1118
        %1128 = vmatprep.subr.bf16.mxu0 %v1017
        %1129 = vmatpush1.bf16.msra.mxu0 %v1016
        %1130 = vmatprep.subr.bf16.mxu0 %v1021
        %1131 = vmatpush1.bf16.msra.mxu0 %v1020
        %1132 = vmatprep.subr.bf16.mxu0 %v1025
        %1133 = vmatpush1.bf16.msra.mxu0 %v1024
        %1134 = vmatprep.subr.bf16.mxu0 %v1029
        %1135 = vmatpush1.bf16.msra.mxu0 %v1028
        %1136 = vmatprep.subr.bf16.mxu0 %v1033
        %1137 = vmatpush1.bf16.msra.mxu0 %v1032
        %1138 = vmatprep.subr.bf16.mxu0 %v1037
        %1139 = vmatpush1.bf16.msra.mxu0 %v1036
        %1140 = vmatprep.subr.bf16.mxu0 %v1041
        %1141 = vmatpush1.bf16.msra.mxu0 %v1040
        %1142 = vmatprep.subr.bf16.mxu0 %v1045
        %1143 = vmatpush1.bf16.msra.mxu0 %v1044
        %1144 = vmatprep.subr.bf16.mxu0 0
        %1145 = vmatpush1.bf16.msra.mxu0 0
        %1146 = vmatprep.subr.bf16.mxu0 0
        %1147 = vmatpush1.bf16.msra.mxu0 0
        %1148 = vmatprep.subr.bf16.mxu0 0
        %1149 = vmatpush1.bf16.msra.mxu0 0
        %1150 = vmatprep.subr.bf16.mxu0 0
        %1151 = vmatpush1.bf16.msra.mxu0 0
        %1152 = vmatprep.subr.bf16.mxu0 0
        %1153 = vmatpush1.bf16.msra.mxu0 0
        %1154 = vmatprep.subr.bf16.mxu0 0
        %1155 = vmatpush1.bf16.msra.mxu0 0
        %1156 = vmatprep.subr.bf16.mxu0 0
        %1157 = vmatpush1.bf16.msra.mxu0 0
        %1158 = vmatprep.subr.bf16.mxu0 0
        %1159 = vmatpush1.bf16.msra.mxu0 0
        %1160 = vmatprep.mubr.bf16.mxu0 0
        %1161 = vmatmul.mubr.bf16.gmra.mrb[0].mxu0 %v1120
        %v1162 = vpop.f32.mrb[0].mxu0
        %v1163 = vadd.f32 %v1067, %v1162
        %v1164 = vpop.f32.mrb[0].mxu0
        %v1165 = vadd.f32 %v1067, %v1164
        %v1166 = vpop.f32.mrb[0].mxu0
        %v1167 = vadd.f32 %v1072, %v1166
        %v1168 = vpop.f32.mrb[0].mxu0
        %v1169 = vadd.f32 %v1072, %v1168
        %1170 = vmatprep.mubr.bf16.mxu0 0
        %1171 = vmatmul.mubr.bf16.gmra.mrb[0].mxu0 %v1121
        %v1172 = vpop.f32.mrb[0].mxu0
        %v1173 = vadd.f32 %v1077, %v1172
        %v1174 = vpop.f32.mrb[0].mxu0
        %v1175 = vadd.f32 %v1077, %v1174
        %v1176 = vpop.f32.mrb[0].mxu0
        %v1177 = vadd.f32 %v1082, %v1176
        %v1178 = vpop.f32.mrb[0].mxu0
        %v1179 = vadd.f32 %v1082, %v1178
        %1180 = vmatprep.mubr.bf16.mxu0 0
        %1181 = vmatmul.mubr.bf16.gmra.mrb[0].mxu0 %v1122
        %v1182 = vpop.f32.mrb[0].mxu0
        %v1183 = vadd.f32 %v1087, %v1182
        %v1184 = vpop.f32.mrb[0].mxu0
        %v1185 = vadd.f32 %v1087, %v1184
        %v1186 = vpop.f32.mrb[0].mxu0
        %v1187 = vadd.f32 %v1092, %v1186
        %v1188 = vpop.f32.mrb[0].mxu0
        %v1189 = vadd.f32 %v1092, %v1188
        %1190 = vmatprep.mubr.bf16.mxu0 0
        %1191 = vmatmul.mubr.bf16.gmra.mrb[0].mxu0 %v1123
        %v1192 = vpop.f32.mrb[0].mxu0
        %v1193 = vadd.f32 %v1097, %v1192
        %v1194 = vpop.f32.mrb[0].mxu0
        %v1195 = vadd.f32 %v1097, %v1194
        %v1196 = vpop.f32.mrb[0].mxu0
        %v1197 = vadd.f32 %v1102, %v1196
        %v1198 = vpop.f32.mrb[0].mxu0
        %v1199 = vadd.f32 %v1102, %v1198
        %1200 = vdwg.mxu0
        %1201 = vmatprep.subr.bf16.mxu0 %v1019
        %1202 = vmatpush1.bf16.msra.mxu0 %v1018
        %1203 = vmatprep.subr.bf16.mxu0 %v1023
        %1204 = vmatpush1.bf16.msra.mxu0 %v1022
        %1205 = vmatprep.subr.bf16.mxu0 %v1027
        %1206 = vmatpush1.bf16.msra.mxu0 %v1026
        %1207 = vmatprep.subr.bf16.mxu0 %v1031
        %1208 = vmatpush1.bf16.msra.mxu0 %v1030
        %1209 = vmatprep.subr.bf16.mxu0 %v1035
        %1210 = vmatpush1.bf16.msra.mxu0 %v1034
        %1211 = vmatprep.subr.bf16.mxu0 %v1039
        %1212 = vmatpush1.bf16.msra.mxu0 %v1038
        %1213 = vmatprep.subr.bf16.mxu0 %v1043
        %1214 = vmatpush1.bf16.msra.mxu0 %v1042
        %1215 = vmatprep.subr.bf16.mxu0 %v1047
        %1216 = vmatpush1.bf16.msra.mxu0 %v1046
        %1217 = vmatprep.subr.bf16.mxu0 0
        %1218 = vmatpush1.bf16.msra.mxu0 0
        %1219 = vmatprep.subr.bf16.mxu0 0
        %1220 = vmatpush1.bf16.msra.mxu0 0
        %1221 = vmatprep.subr.bf16.mxu0 0
        %1222 = vmatpush1.bf16.msra.mxu0 0
        %1223 = vmatprep.subr.bf16.mxu0 0
        %1224 = vmatpush1.bf16.msra.mxu0 0
        %1225 = vmatprep.subr.bf16.mxu0 0
        %1226 = vmatpush1.bf16.msra.mxu0 0
        %1227 = vmatprep.subr.bf16.mxu0 0
        %1228 = vmatpush1.bf16.msra.mxu0 0
        %1229 = vmatprep.subr.bf16.mxu0 0
        %1230 = vmatpush1.bf16.msra.mxu0 0
        %1231 = vmatprep.subr.bf16.mxu0 0
        %1232 = vmatpush1.bf16.msra.mxu0 0
        %1233 = vmatprep.mubr.bf16.mxu0 0
        %1234 = vmatmul.mubr.bf16.gmra.mrb[0].mxu0 %v1120
        %v1235 = vpop.f32.mrb[0].mxu0
        %v1236 = vadd.f32 %v1067, %v1235
        %v1237 = vpop.f32.mrb[0].mxu0
        %v1238 = vadd.f32 %v1067, %v1237
        %v1239 = vpop.f32.mrb[0].mxu0
        %v1240 = vadd.f32 %v1072, %v1239
        %v1241 = vpop.f32.mrb[0].mxu0
        %v1242 = vadd.f32 %v1072, %v1241
        %1243 = vmatprep.mubr.bf16.mxu0 0
        %1244 = vmatmul.mubr.bf16.gmra.mrb[0].mxu0 %v1121
        %v1245 = vpop.f32.mrb[0].mxu0
        %v1246 = vadd.f32 %v1077, %v1245
        %v1247 = vpop.f32.mrb[0].mxu0
        %v1248 = vadd.f32 %v1077, %v1247
        %v1249 = vpop.f32.mrb[0].mxu0
        %v1250 = vadd.f32 %v1082, %v1249
        %v1251 = vpop.f32.mrb[0].mxu0
        %v1252 = vadd.f32 %v1082, %v1251
        %1253 = vmatprep.mubr.bf16.mxu0 0
        %1254 = vmatmul.mubr.bf16.gmra.mrb[0].mxu0 %v1122
        %v1255 = vpop.f32.mrb[0].mxu0
        %v1256 = vadd.f32 %v1087, %v1255
        %v1257 = vpop.f32.mrb[0].mxu0
        %v1258 = vadd.f32 %v1087, %v1257
        %v1259 = vpop.f32.mrb[0].mxu0
        %v1260 = vadd.f32 %v1092, %v1259
        %v1261 = vpop.f32.mrb[0].mxu0
        %v1262 = vadd.f32 %v1092, %v1261
        %1263 = vmatprep.mubr.bf16.mxu0 0
        %1264 = vmatmul.mubr.bf16.gmra.mrb[0].mxu0 %v1123
        %v1265 = vpop.f32.mrb[0].mxu0
        %v1266 = vadd.f32 %v1097, %v1265
        %v1267 = vpop.f32.mrb[0].mxu0
        %v1268 = vadd.f32 %v1097, %v1267
        %v1269 = vpop.f32.mrb[0].mxu0
        %v1270 = vadd.f32 %v1102, %v1269
        %v1271 = vpop.f32.mrb[0].mxu0
        %v1272 = vadd.f32 %v1102, %v1271
        %1273 = vdwg.mxu0
        %v1274 = vmax.f32 %v1163, 0.0
        %v1275 = vmax.f32 %v1165, 0.0
        %v1276 = vmax.f32 %v1236, 0.0
        %v1277 = vmax.f32 %v1238, 0.0
        %v1278 = vmax.f32 %v1167, 0.0
        %v1279 = vmax.f32 %v1169, 0.0
        %v1280 = vmax.f32 %v1240, 0.0
        %v1281 = vmax.f32 %v1242, 0.0
        %v1282 = vmax.f32 %v1173, 0.0
        %v1283 = vmax.f32 %v1175, 0.0
        %v1284 = vmax.f32 %v1246, 0.0
        %v1285 = vmax.f32 %v1248, 0.0
        %v1286 = vmax.f32 %v1177, 0.0
        %v1287 = vmax.f32 %v1179, 0.0
        %v1288 = vmax.f32 %v1250, 0.0
        %v1289 = vmax.f32 %v1252, 0.0
        %v1290 = vmax.f32 %v1183, 0.0
        %v1291 = vmax.f32 %v1185, 0.0
        %v1292 = vmax.f32 %v1256, 0.0
        %v1293 = vmax.f32 %v1258, 0.0
        %v1294 = vmax.f32 %v1187, 0.0
        %v1295 = vmax.f32 %v1189, 0.0
        %v1296 = vmax.f32 %v1260, 0.0
        %v1297 = vmax.f32 %v1262, 0.0
        %v1298 = vmax.f32 %v1193, 0.0
        %v1299 = vmax.f32 %v1195, 0.0
        %v1300 = vmax.f32 %v1266, 0.0
        %v1301 = vmax.f32 %v1268, 0.0
        %v1302 = vmax.f32 %v1197, 0.0
        %v1303 = vmax.f32 %v1199, 0.0
        %v1304 = vmax.f32 %v1270, 0.0
        %v1305 = vmax.f32 %v1272, 0.0
        %v1306 = vpack.c.bf16 %v1278, %v1274
        %v1307 = vpack.c.bf16 %v1279, %v1275
        %v1308 = vpack.c.bf16 %v1280, %v1276
        %v1309 = vpack.c.bf16 %v1281, %v1277
        %v1310 = vpack.c.bf16 %v1286, %v1282
        %v1311 = vpack.c.bf16 %v1287, %v1283
        %v1312 = vpack.c.bf16 %v1288, %v1284
        %v1313 = vpack.c.bf16 %v1289, %v1285
        %v1314 = vpack.c.bf16 %v1294, %v1290
        %v1315 = vpack.c.bf16 %v1295, %v1291
        %v1316 = vpack.c.bf16 %v1296, %v1292
        %v1317 = vpack.c.bf16 %v1297, %v1293
        %v1318 = vpack.c.bf16 %v1302, %v1298
        %v1319 = vpack.c.bf16 %v1303, %v1299
        %v1320 = vpack.c.bf16 %v1304, %v1300
        %v1321 = vpack.c.bf16 %v1305, %v1301
        %v1322 = vld [vmem:[%s5] sm:$0xf]
        %v1323 = vld [vmem:[%s5 + $0x4] sm:$0xf]
        %v1324 = vld [vmem:[%s5 + $0x8] sm:$0xf]
        %v1325 = vld [vmem:[%s5 + $0xc] sm:$0xf]
        %v1326 = vld [vmem:[%s5 + $0x10] sm:$0xf]
        %v1327 = vld [vmem:[%s5 + $0x14] sm:$0xf]
        %v1328 = vld [vmem:[%s5 + $0x18] sm:$0xf]
        %v1329 = vld [vmem:[%s5 + $0x1c] sm:$0xf]
        %v1330 = vld [vmem:[%s6] sm:$0xff]
        %v1331 = vld [vmem:[%s6 + $0x8] sm:$0xff]
        %v1332 = vld [vmem:[%s6 + $0x10] sm:$0xff]
        %v1333 = vld [vmem:[%s6 + $0x18] sm:$0xff]
        %v1334 = vld [vmem:[%s6 + $0x20] sm:$0xff]
        %v1335 = vld [vmem:[%s6 + $0x28] sm:$0xff]
        %v1336 = vld [vmem:[%s6 + $0x30] sm:$0xff]
        %v1337 = vld [vmem:[%s6 + $0x38] sm:$0xff]
        %1339 = vset.pattern.permute.xlu0 0
        %1340 = vperm.xlu0 %1339, %v1330
        %v1341 = vpop.permute.xlu0 %1340
        %1344 = vset.pattern.permute.xlu0 0
        %1345 = vperm.xlu0 %1344, %v1331
        %v1346 = vpop.permute.xlu0 %1345
        %1349 = vset.pattern.permute.xlu0 0
        %1350 = vperm.xlu0 %1349, %v1332
        %v1351 = vpop.permute.xlu0 %1350
        %1354 = vset.pattern.permute.xlu0 0
        %1355 = vperm.xlu0 %1354, %v1333
        %v1356 = vpop.permute.xlu0 %1355
        %1359 = vset.pattern.permute.xlu0 0
        %1360 = vperm.xlu0 %1359, %v1334
        %v1361 = vpop.permute.xlu0 %1360
        %1364 = vset.pattern.permute.xlu0 0
        %1365 = vperm.xlu0 %1364, %v1335
        %v1366 = vpop.permute.xlu0 %1365
        %1369 = vset.pattern.permute.xlu0 0
        %1370 = vperm.xlu0 %1369, %v1336
        %v1371 = vpop.permute.xlu0 %1370
        %1374 = vset.pattern.permute.xlu0 0
        %1375 = vperm.xlu0 %1374, %v1337
        %v1376 = vpop.permute.xlu0 %1375
        %v1386 = vunpack.c.l.b16 %v1322
        %v1387 = vunpack.c.l.b16 %v1323
        %v1388 = vunpack.c.l.b16 %v1324
        %v1389 = vunpack.c.l.b16 %v1325
        %v1390 = vunpack.c.l.b16 %v1326
        %v1391 = vunpack.c.l.b16 %v1327
        %v1392 = vunpack.c.l.b16 %v1328
        %v1393 = vunpack.c.l.b16 %v1329
        %v1394 = vpack.c.b16 %v1387, %v1386
        %v1395 = vpack.c.b16 %v1389, %v1388
        %v1396 = vpack.c.b16 %v1391, %v1390
        %v1397 = vpack.c.b16 %v1393, %v1392
        %vm1398 = vcmask 523264
        %v1400 = vsel %vm1398, %v1394, 0
        %v1403 = vsel %vm1398, %v1395, 0
        %v1406 = vsel %vm1398, %v1396, 0
        %v1409 = vsel %vm1398, %v1397, 0
        %1411 = vmatprep.subr.bf16.mxu0 %v1307
        %1412 = vmatpush1.bf16.msra.mxu0 %v1306
        %1413 = vmatprep.subr.bf16.mxu0 %v1311
        %1414 = vmatpush1.bf16.msra.mxu0 %v1310
        %1415 = vmatprep.subr.bf16.mxu0 %v1315
        %1416 = vmatpush1.bf16.msra.mxu0 %v1314
        %1417 = vmatprep.subr.bf16.mxu0 %v1319
        %1418 = vmatpush1.bf16.msra.mxu0 %v1318
        %1419 = vmatprep.subr.bf16.mxu0 0
        %1420 = vmatpush1.bf16.msra.mxu0 0
        %1421 = vmatprep.subr.bf16.mxu0 0
        %1422 = vmatpush1.bf16.msra.mxu0 0
        %1423 = vmatprep.subr.bf16.mxu0 0
        %1424 = vmatpush1.bf16.msra.mxu0 0
        %1425 = vmatprep.subr.bf16.mxu0 0
        %1426 = vmatpush1.bf16.msra.mxu0 0
        %1427 = vmatprep.subr.bf16.mxu0 0
        %1428 = vmatpush1.bf16.msra.mxu0 0
        %1429 = vmatprep.subr.bf16.mxu0 0
        %1430 = vmatpush1.bf16.msra.mxu0 0
        %1431 = vmatprep.subr.bf16.mxu0 0
        %1432 = vmatpush1.bf16.msra.mxu0 0
        %1433 = vmatprep.subr.bf16.mxu0 0
        %1434 = vmatpush1.bf16.msra.mxu0 0
        %1435 = vmatprep.subr.bf16.mxu0 0
        %1436 = vmatpush1.bf16.msra.mxu0 0
        %1437 = vmatprep.subr.bf16.mxu0 0
        %1438 = vmatpush1.bf16.msra.mxu0 0
        %1439 = vmatprep.subr.bf16.mxu0 0
        %1440 = vmatpush1.bf16.msra.mxu0 0
        %1441 = vmatprep.subr.bf16.mxu0 0
        %1442 = vmatpush1.bf16.msra.mxu0 0
        %1443 = vmatprep.mubr.bf16.mxu0 0
        %1444 = vmatmul.mubr.bf16.gmra.mrb[0].mxu0 %v1400
        %v1445 = vpop.f32.mrb[0].mxu0
        %v1446 = vadd.f32 %v1341, %v1445
        %v1447 = vpop.f32.mrb[0].mxu0
        %v1448 = vadd.f32 %v1341, %v1447
        %v1449 = vpop.f32.mrb[0].mxu0
        %v1450 = vadd.f32 %v1346, %v1449
        %v1451 = vpop.f32.mrb[0].mxu0
        %v1452 = vadd.f32 %v1346, %v1451
        %1453 = vmatprep.mubr.bf16.mxu0 0
        %1454 = vmatmul.mubr.bf16.gmra.mrb[0].mxu0 %v1403
        %v1455 = vpop.f32.mrb[0].mxu0
        %v1456 = vadd.f32 %v1351, %v1455
        %v1457 = vpop.f32.mrb[0].mxu0
        %v1458 = vadd.f32 %v1351, %v1457
        %v1459 = vpop.f32.mrb[0].mxu0
        %v1460 = vadd.f32 %v1356, %v1459
        %v1461 = vpop.f32.mrb[0].mxu0
        %v1462 = vadd.f32 %v1356, %v1461
        %1463 = vmatprep.mubr.bf16.mxu0 0
        %1464 = vmatmul.mubr.bf16.gmra.mrb[0].mxu0 %v1406
        %v1465 = vpop.f32.mrb[0].mxu0
        %v1466 = vadd.f32 %v1361, %v1465
        %v1467 = vpop.f32.mrb[0].mxu0
        %v1468 = vadd.f32 %v1361, %v1467
        %v1469 = vpop.f32.mrb[0].mxu0
        %v1470 = vadd.f32 %v1366, %v1469
        %v1471 = vpop.f32.mrb[0].mxu0
        %v1472 = vadd.f32 %v1366, %v1471
        %1473 = vmatprep.mubr.bf16.mxu0 0
        %1474 = vmatmul.mubr.bf16.gmra.mrb[0].mxu0 %v1409
        %v1475 = vpop.f32.mrb[0].mxu0
        %v1476 = vadd.f32 %v1371, %v1475
        %v1477 = vpop.f32.mrb[0].mxu0
        %v1478 = vadd.f32 %v1371, %v1477
        %v1479 = vpop.f32.mrb[0].mxu0
        %v1480 = vadd.f32 %v1376, %v1479
        %v1481 = vpop.f32.mrb[0].mxu0
        %v1482 = vadd.f32 %v1376, %v1481
        %1483 = vdwg.mxu0
        %1484 = vmatprep.subr.bf16.mxu0 %v1309
        %1485 = vmatpush1.bf16.msra.mxu0 %v1308
        %1486 = vmatprep.subr.bf16.mxu0 %v1313
        %1487 = vmatpush1.bf16.msra.mxu0 %v1312
        %1488 = vmatprep.subr.bf16.mxu0 %v1317
        %1489 = vmatpush1.bf16.msra.mxu0 %v1316
        %1490 = vmatprep.subr.bf16.mxu0 %v1321
        %1491 = vmatpush1.bf16.msra.mxu0 %v1320
        %1492 = vmatprep.subr.bf16.mxu0 0
        %1493 = vmatpush1.bf16.msra.mxu0 0
        %1494 = vmatprep.subr.bf16.mxu0 0
        %1495 = vmatpush1.bf16.msra.mxu0 0
        %1496 = vmatprep.subr.bf16.mxu0 0
        %1497 = vmatpush1.bf16.msra.mxu0 0
        %1498 = vmatprep.subr.bf16.mxu0 0
        %1499 = vmatpush1.bf16.msra.mxu0 0
        %1500 = vmatprep.subr.bf16.mxu0 0
        %1501 = vmatpush1.bf16.msra.mxu0 0
        %1502 = vmatprep.subr.bf16.mxu0 0
        %1503 = vmatpush1.bf16.msra.mxu0 0
        %1504 = vmatprep.subr.bf16.mxu0 0
        %1505 = vmatpush1.bf16.msra.mxu0 0
        %1506 = vmatprep.subr.bf16.mxu0 0
        %1507 = vmatpush1.bf16.msra.mxu0 0
        %1508 = vmatprep.subr.bf16.mxu0 0
        %1509 = vmatpush1.bf16.msra.mxu0 0
        %1510 = vmatprep.subr.bf16.mxu0 0
        %1511 = vmatpush1.bf16.msra.mxu0 0
        %1512 = vmatprep.subr.bf16.mxu0 0
        %1513 = vmatpush1.bf16.msra.mxu0 0
        %1514 = vmatprep.subr.bf16.mxu0 0
        %1515 = vmatpush1.bf16.msra.mxu0 0
        %1516 = vmatprep.mubr.bf16.mxu0 0
        %1517 = vmatmul.mubr.bf16.gmra.mrb[0].mxu0 %v1400
        %v1518 = vpop.f32.mrb[0].mxu0
        %v1519 = vadd.f32 %v1341, %v1518
        %v1520 = vpop.f32.mrb[0].mxu0
        %v1521 = vadd.f32 %v1341, %v1520
        %v1522 = vpop.f32.mrb[0].mxu0
        %v1523 = vadd.f32 %v1346, %v1522
        %v1524 = vpop.f32.mrb[0].mxu0
        %v1525 = vadd.f32 %v1346, %v1524
        %1526 = vmatprep.mubr.bf16.mxu0 0
        %1527 = vmatmul.mubr.bf16.gmra.mrb[0].mxu0 %v1403
        %v1528 = vpop.f32.mrb[0].mxu0
        %v1529 = vadd.f32 %v1351, %v1528
        %v1530 = vpop.f32.mrb[0].mxu0
        %v1531 = vadd.f32 %v1351, %v1530
        %v1532 = vpop.f32.mrb[0].mxu0
        %v1533 = vadd.f32 %v1356, %v1532
        %v1534 = vpop.f32.mrb[0].mxu0
        %v1535 = vadd.f32 %v1356, %v1534
        %1536 = vmatprep.mubr.bf16.mxu0 0
        %1537 = vmatmul.mubr.bf16.gmra.mrb[0].mxu0 %v1406
        %v1538 = vpop.f32.mrb[0].mxu0
        %v1539 = vadd.f32 %v1361, %v1538
        %v1540 = vpop.f32.mrb[0].mxu0
        %v1541 = vadd.f32 %v1361, %v1540
        %v1542 = vpop.f32.mrb[0].mxu0
        %v1543 = vadd.f32 %v1366, %v1542
        %v1544 = vpop.f32.mrb[0].mxu0
        %v1545 = vadd.f32 %v1366, %v1544
        %1546 = vmatprep.mubr.bf16.mxu0 0
        %1547 = vmatmul.mubr.bf16.gmra.mrb[0].mxu0 %v1409
        %v1548 = vpop.f32.mrb[0].mxu0
        %v1549 = vadd.f32 %v1371, %v1548
        %v1550 = vpop.f32.mrb[0].mxu0
        %v1551 = vadd.f32 %v1371, %v1550
        %v1552 = vpop.f32.mrb[0].mxu0
        %v1553 = vadd.f32 %v1376, %v1552
        %v1554 = vpop.f32.mrb[0].mxu0
        %v1555 = vadd.f32 %v1376, %v1554
        %1556 = vdwg.mxu0
        %v1557 = vmax.f32 %v1446, 0.0
        %v1558 = vmax.f32 %v1448, 0.0
        %v1559 = vmax.f32 %v1519, 0.0
        %v1560 = vmax.f32 %v1521, 0.0
        %v1561 = vmax.f32 %v1450, 0.0
        %v1562 = vmax.f32 %v1452, 0.0
        %v1563 = vmax.f32 %v1523, 0.0
        %v1564 = vmax.f32 %v1525, 0.0
        %v1565 = vmax.f32 %v1456, 0.0
        %v1566 = vmax.f32 %v1458, 0.0
        %v1567 = vmax.f32 %v1529, 0.0
        %v1568 = vmax.f32 %v1531, 0.0
        %v1569 = vmax.f32 %v1460, 0.0
        %v1570 = vmax.f32 %v1462, 0.0
        %v1571 = vmax.f32 %v1533, 0.0
        %v1572 = vmax.f32 %v1535, 0.0
        %v1573 = vmax.f32 %v1466, 0.0
        %v1574 = vmax.f32 %v1468, 0.0
        %v1575 = vmax.f32 %v1539, 0.0
        %v1576 = vmax.f32 %v1541, 0.0
        %v1577 = vmax.f32 %v1470, 0.0
        %v1578 = vmax.f32 %v1472, 0.0
        %v1579 = vmax.f32 %v1543, 0.0
        %v1580 = vmax.f32 %v1545, 0.0
        %v1581 = vmax.f32 %v1476, 0.0
        %v1582 = vmax.f32 %v1478, 0.0
        %v1583 = vmax.f32 %v1549, 0.0
        %v1584 = vmax.f32 %v1551, 0.0
        %v1585 = vmax.f32 %v1480, 0.0
        %v1586 = vmax.f32 %v1482, 0.0
        %v1587 = vmax.f32 %v1553, 0.0
        %v1588 = vmax.f32 %v1555, 0.0
        %v1589 = vpack.c.bf16 %v1561, %v1557
        %v1590 = vpack.c.bf16 %v1562, %v1558
        %v1591 = vpack.c.bf16 %v1563, %v1559
        %v1592 = vpack.c.bf16 %v1564, %v1560
        %v1593 = vpack.c.bf16 %v1569, %v1565
        %v1594 = vpack.c.bf16 %v1570, %v1566
        %v1595 = vpack.c.bf16 %v1571, %v1567
        %v1596 = vpack.c.bf16 %v1572, %v1568
        %v1597 = vpack.c.bf16 %v1577, %v1573
        %v1598 = vpack.c.bf16 %v1578, %v1574
        %v1599 = vpack.c.bf16 %v1579, %v1575
        %v1600 = vpack.c.bf16 %v1580, %v1576
        %v1601 = vpack.c.bf16 %v1585, %v1581
        %v1602 = vpack.c.bf16 %v1586, %v1582
        %v1603 = vpack.c.bf16 %v1587, %v1583
        %v1604 = vpack.c.bf16 %v1588, %v1584
        %v1605 = vld [vmem:[%s7] sm:$0x1]
        %v1606 = vld [vmem:[#allocation2] sm:$0x1]
        %1608 = vset.pattern.permute.xlu0 0
        %1609 = vperm.xlu0 %1608, %v1606
        %v1610 = vpop.permute.xlu0 %1609
        %v1612 = vlaneseq
        %v1613 = vshrl.u32 %v1612, 7
        %v1614 = vsub.s32 0, %v1613
        %v1615 = vrot.slane %v1610, %v1614
        %v1617 = vsel %vm1398, %v1605, 0
        %1619 = vmatprep.subr.bf16.mxu0 %v1590
        %1620 = vmatpush1.bf16.msra.mxu0 %v1589
        %1621 = vmatprep.subr.bf16.mxu0 %v1594
        %1622 = vmatpush1.bf16.msra.mxu0 %v1593
        %1623 = vmatprep.subr.bf16.mxu0 %v1598
        %1624 = vmatpush1.bf16.msra.mxu0 %v1597
        %1625 = vmatprep.subr.bf16.mxu0 %v1602
        %1626 = vmatpush1.bf16.msra.mxu0 %v1601
        %1627 = vmatprep.subr.bf16.mxu0 0
        %1628 = vmatpush1.bf16.msra.mxu0 0
        %1629 = vmatprep.subr.bf16.mxu0 0
        %1630 = vmatpush1.bf16.msra.mxu0 0
        %1631 = vmatprep.subr.bf16.mxu0 0
        %1632 = vmatpush1.bf16.msra.mxu0 0
        %1633 = vmatprep.subr.bf16.mxu0 0
        %1634 = vmatpush1.bf16.msra.mxu0 0
        %1635 = vmatprep.subr.bf16.mxu0 0
        %1636 = vmatpush1.bf16.msra.mxu0 0
        %1637 = vmatprep.subr.bf16.mxu0 0
        %1638 = vmatpush1.bf16.msra.mxu0 0
        %1639 = vmatprep.subr.bf16.mxu0 0
        %1640 = vmatpush1.bf16.msra.mxu0 0
        %1641 = vmatprep.subr.bf16.mxu0 0
        %1642 = vmatpush1.bf16.msra.mxu0 0
        %1643 = vmatprep.subr.bf16.mxu0 0
        %1644 = vmatpush1.bf16.msra.mxu0 0
        %1645 = vmatprep.subr.bf16.mxu0 0
        %1646 = vmatpush1.bf16.msra.mxu0 0
        %1647 = vmatprep.subr.bf16.mxu0 0
        %1648 = vmatpush1.bf16.msra.mxu0 0
        %1649 = vmatprep.subr.bf16.mxu0 0
        %1650 = vmatpush1.bf16.msra.mxu0 0
        %1651 = vmatprep.mubr.bf16.mxu0 0
        %1652 = vmatmul.mubr.bf16.gmra.mrb[0].mxu0 %v1617
        %v1653 = vpop.f32.mrb[0].mxu0
        %v1654 = vadd.f32 %v1615, %v1653
        %v1655 = vpop.f32.mrb[0].mxu0
        %v1656 = vadd.f32 %v1615, %v1655
        %v1657 = vpop.f32.mrb[0].mxu0
        %v1658 = vpop.f32.mrb[0].mxu0
        %1659 = vdwg.mxu0
        %1660 = vmatprep.subr.bf16.mxu0 %v1592
        %1661 = vmatpush1.bf16.msra.mxu0 %v1591
        %1662 = vmatprep.subr.bf16.mxu0 %v1596
        %1663 = vmatpush1.bf16.msra.mxu0 %v1595
        %1664 = vmatprep.subr.bf16.mxu0 %v1600
        %1665 = vmatpush1.bf16.msra.mxu0 %v1599
        %1666 = vmatprep.subr.bf16.mxu0 %v1604
        %1667 = vmatpush1.bf16.msra.mxu0 %v1603
        %1668 = vmatprep.subr.bf16.mxu0 0
        %1669 = vmatpush1.bf16.msra.mxu0 0
        %1670 = vmatprep.subr.bf16.mxu0 0
        %1671 = vmatpush1.bf16.msra.mxu0 0
        %1672 = vmatprep.subr.bf16.mxu0 0
        %1673 = vmatpush1.bf16.msra.mxu0 0
        %1674 = vmatprep.subr.bf16.mxu0 0
        %1675 = vmatpush1.bf16.msra.mxu0 0
        %1676 = vmatprep.subr.bf16.mxu0 0
        %1677 = vmatpush1.bf16.msra.mxu0 0
        %1678 = vmatprep.subr.bf16.mxu0 0
        %1679 = vmatpush1.bf16.msra.mxu0 0
        %1680 = vmatprep.subr.bf16.mxu0 0
        %1681 = vmatpush1.bf16.msra.mxu0 0
        %1682 = vmatprep.subr.bf16.mxu0 0
        %1683 = vmatpush1.bf16.msra.mxu0 0
        %1684 = vmatprep.subr.bf16.mxu0 0
        %1685 = vmatpush1.bf16.msra.mxu0 0
        %1686 = vmatprep.subr.bf16.mxu0 0
        %1687 = vmatpush1.bf16.msra.mxu0 0
        %1688 = vmatprep.subr.bf16.mxu0 0
        %1689 = vmatpush1.bf16.msra.mxu0 0
        %1690 = vmatprep.subr.bf16.mxu0 0
        %1691 = vmatpush1.bf16.msra.mxu0 0
        %1692 = vmatprep.mubr.bf16.mxu0 0
        %1693 = vmatmul.mubr.bf16.gmra.mrb[0].mxu0 %v1617
        %v1694 = vpop.f32.mrb[0].mxu0
        %v1695 = vadd.f32 %v1615, %v1694
        %v1696 = vpop.f32.mrb[0].mxu0
        %v1697 = vadd.f32 %v1615, %v1696
        %v1698 = vpop.f32.mrb[0].mxu0
        %v1699 = vpop.f32.mrb[0].mxu0
        %1700 = vdwg.mxu0
        %v1705 = vcombine.low %v1654, %v1656
        %v1706 = vcombine.low %v1695, %v1697
        %v1708 = vunpack.c.l.s4 1966171168
        %v1709 = vunpack.c.0.s8 %v1708
        %v1710 = vlaneseq
        %v1711 = vshrl.u32 %v1710, 7
        %v1712 = vsub.s32 %v1709, %v1711
        %v1713 = vrot.slane %v1705, %v1712
        %v1715 = vunpack.c.l.s4 1966171168
        %v1716 = vunpack.c.0.s8 %v1715
        %v1717 = vlaneseq
        %v1718 = vshrl.u32 %v1717, 7
        %v1719 = vsub.s32 %v1716, %v1718
        %v1720 = vrot.slane %v1706, %v1719
        %v1721 = vcombine.low %v1713, %v1720
        %v1723 = vunpack.c.l.s4 1966171168
        %v1724 = vunpack.c.0.s8 %v1723
        %v1725 = vlaneseq
        %v1726 = vshrl.u32 %v1725, 7
        %v1727 = vsub.s32 %v1724, %v1726
        %v1728 = vrot.slane %v1721, %v1727
        %v1730 = vlaneseq
        %vm1731 = vcmp.ge.s32.totalorder %v1730, 0
        %vm1732 = vcmp.lt.s32.totalorder %v1730, 512
        %vm1733 = vmand %vm1731, %vm1732
        %1734 = vst.msk [vmem:[%s340] sm:$0xf] %vm1733, %v1728
        %s1735 = sand.u32 %s227, 1
        %s1736 = scalar_lea.sflag [#allocation4], %s1735
        %s1737 = sand.u32 %s227, 1
        %s1738 = smul.addr %s1737, 4
        %s1739 = scalar_lea.vmem [#allocation3], %s1738
        // Predicated region
        $region57: #{rainnet_forward.1} parent=55 // pred_check
          %p1740 = pneg %p237
        $region58: #{rainnet_forward.1} parent=55 // pred_check_branch
          %1742 = sbr.rel (%p1740) target = $region60
        $region59: #{rainnet_forward.1} parent=55 // pred_region
          %s1743 = smul.u32 4, %s25
          %s1745 = ssub.s32 64, 64
          %1746 = vsyncadd %s1736, %s1745
          %s1747 = smul.addr %s1743, 16
          %s1748 = scalar_lea.hbm %s9, %s1747
          %s1750 = sshll.u32 %s1739, 4
          %s1751 = int_to_ptr.vmem [resolvable:$true] %s1750
          %1753 = dma.vmem_to_hbm [thread:$0]  %s1751, 64, %s1748, %s1736
        $region60: #{rainnet_forward.1} parent=55 // pred_fallthru
          _
      $region56: #{rainnet_forward.1} parent=5 // pred_fallthru
        _
      %p1754 = scmp.le.s32.totalorder 2, %s20
      // Predicated region
      $region61: #{rainnet_forward.1} parent=5 // pred_check
        %p1755 = pneg %p1754
      $region62: #{rainnet_forward.1} parent=5 // pred_check_branch
        %1757 = sbr.rel (%p1755) target = $region64
      $region63: #{rainnet_forward.1} parent=5 // pred_region
        %s1758 = ssub.s32 %s20, 2
        // Predicated region
        $region65: #{rainnet_forward.1} parent=63 // pred_check
          %p1759 = pneg %p243
        $region66: #{rainnet_forward.1} parent=63 // pred_check_branch
          %1761 = sbr.rel (%p1759) target = $region68
        $region67: #{rainnet_forward.1} parent=63 // pred_region
          %s1762 = sand.u32 %s228, 1
          %s1763 = scalar_lea.sflag [#allocation4], %s1762
          %s1764 = sand.u32 %s228, 1
          %s1765 = smul.addr %s1764, 4
          %s1766 = scalar_lea.vmem [#allocation3], %s1765
          %1767 = dma.done %s1763, 64
        $region68: #{rainnet_forward.1} parent=63 // pred_fallthru
          _
      $region64: #{rainnet_forward.1} parent=5 // pred_fallthru
        _
    $region6: #{rainnet_forward.1} parent=1 // loop_footer
      %s24 = sadd.s32 1, %s20
    $region7: #{rainnet_forward.1} parent=1 // loop_footer_branch
      %19 = sbr.rel target = $region3
    $region8: #{rainnet_forward.1} parent=1 // loop_exit
      _
    %1768 = vsyncpa [#allocation4], 1
    %s1769 = scalar_lea.sflag [#allocation4], 1
    %1770 = vsyncpa %s1769, 1

</llo_original>
